<compile_context>
chip_gen: v7x
topology: tpu7x:2x2x1
jax: 0.10.0
libtpu: 0.0.40
codegen_flags: <defaults>
</compile_context>

<pallas_src>
import functools

import jax
import jax.numpy as jnp
from jax import lax
from jax.experimental import pallas as pl
from jax.experimental.pallas import tpu as pltpu


def _round_up(x, m):
    return (x + m - 1) // m * m


def _pad_cols_grouped(a, h, hp, groups):
    """Place `groups` contiguous width-h column blocks of `a` at lane offsets g*hp."""
    a = a.astype(jnp.float32)
    out = jnp.zeros((a.shape[0], groups * hp), jnp.float32)
    for g in range(groups):
        out = out.at[:, g * hp:g * hp + h].set(a[:, g * h:(g + 1) * h])
    return out


# -----------------------------------------------------------------------------
# Fused kernel: edge message + one-hot MXU scatter-add, then GRU + LayerNorm
# epilogue on the last edge tile (accumulator stays VMEM resident throughout).
# -----------------------------------------------------------------------------
def _fused_processor_kernel(src_ref,    # VMEM (1, 1, TE) int32  lane-dense src ids
                            dst_ref,    # VMEM (1, 1, TE) int32  lane-dense dst ids
                            ew_ref,     # VMEM (1, 1, TE) f32    lane-dense edge weights
                            xT_ref,     # VMEM (FP, N_pad)       packed features, feature-major
                            w_ew_ref,   # VMEM (FP, 1)           Linear(1, 3H) weight (column)
                            b_ew_ref,   # VMEM (FP, 1)
                            w_ih_ref,   # VMEM (FP, 3*HP)
                            b_ih_ref,   # VMEM (1, 3*HP)
                            w_hh_ref,   # VMEM (HP, 3*HP)
                            b_hh_ref,   # VMEM (1, 3*HP)
                            gamma_ref,  # VMEM (1, HP)
                            beta_ref,   # VMEM (1, HP)
                            lh_ref,     # VMEM (N_pad, HP)       last_hidden (resident)
                            out_ref,    # VMEM (N_pad, HP)       output (written on last tile)
                            agg_ref,    # VMEM (N_pad, FP)       scratch accumulator
                            *, hidden_dim, hp):
    t = pl.program_id(0)
    n_pad = agg_ref.shape[0]
    te = src_ref.shape[-1]

    @pl.when(t == 0)
    def _():
        agg_ref[...] = jnp.zeros_like(agg_ref)

    src = src_ref[0]                                    # (1, TE) int32
    dst = dst_ref[0]                                    # (1, TE) int32
    ew = ew_ref[0]                                      # (1, TE) f32

    node_iota = lax.broadcasted_iota(jnp.int32, (n_pad, te), 0)
    onehot_src = (node_iota == src).astype(jnp.float32)   # (N_pad, TE)
    # padded edges carry dst = N_pad (out of range) -> all-zero one-hot column
    onehot_dst = (node_iota == dst).astype(jnp.float32)   # (N_pad, TE)

    # gather x[src] on the MXU, feature-major: (FP, N_pad) @ (N_pad, TE) -> (FP, TE)
    x_srcT = jnp.dot(xT_ref[...], onehot_src, preferred_element_type=jnp.float32)
    # GRUConv.message: relu(x_j + edge_weight_scaler(edge_weight)) -- VPU outer product
    msgT = jnp.maximum(x_srcT + w_ew_ref[...] * ew + b_ew_ref[...], 0.0)   # (FP, TE)
    # scatter-add (aggr='add') on the MXU: (N_pad, TE) x (FP, TE)^T -> (N_pad, FP)
    agg_ref[...] += lax.dot_general(onehot_dst, msgT,
                                    dimension_numbers=(((1,), (1,)), ((), ())),
                                    preferred_element_type=jnp.float32)

    @pl.when(t == pl.num_programs(0) - 1)
    def _():
        agg = agg_ref[...]                               # (N_pad, FP)
        h_prev = lh_ref[...]                             # (N_pad, HP)
        gx = jnp.dot(agg, w_ih_ref[...], preferred_element_type=jnp.float32) + b_ih_ref[...]
        gh = jnp.dot(h_prev, w_hh_ref[...], preferred_element_type=jnp.float32) + b_hh_ref[...]

        # gate slices land exactly on 128-lane boundaries (HP = 128)
        r = jax.nn.sigmoid(gx[:, :hp] + gh[:, :hp])
        z = jax.nn.sigmoid(gx[:, hp:2 * hp] + gh[:, hp:2 * hp])
        n = jnp.tanh(gx[:, 2 * hp:] + r * gh[:, 2 * hp:])
        h_new = (1.0 - z) * n + z * h_prev               # (N_pad, HP), zero in padded lanes

        # LayerNorm over the real `hidden_dim` lanes only
        lane = lax.broadcasted_iota(jnp.int32, (1, hp), 1)
        mask = (lane < hidden_dim).astype(jnp.float32)
        inv_h = 1.0 / float(hidden_dim)
        mean = jnp.sum(h_new * mask, axis=-1, keepdims=True) * inv_h
        centered = (h_new - mean) * mask
        var = jnp.sum(centered * centered, axis=-1, keepdims=True) * inv_h
        out_ref[...] = centered * lax.rsqrt(var + 1e-5) * gamma_ref[...] + beta_ref[...]


# -----------------------------------------------------------------------------
# Wrapper / glue
# -----------------------------------------------------------------------------
def processor_forward(input_hidden, hidden, last_hidden, edge_index, edge_weight, params,
                      *, hp=128, edge_tile=256):
    N, H = hidden.shape
    E = int(edge_weight.shape[0])
    F = 3 * H
    HP = hp                    # padded hidden lanes (gate slice granularity)
    FP = hp                    # 3H packed into a single 128-lane group
    assert F <= FP, "3 * HIDDEN_DIM must fit in one 128-lane group"
    N_pad = _round_up(max(N, 8), 8)
    TE = min(_round_up(edge_tile, 128), _round_up(max(E, 1), 128))
    E_pad = _round_up(E, TE)
    num_tiles = E_pad // TE
    f32 = jnp.float32

    # stack_hidden (PROCESSOR_USE_LAST_HIDDEN=True): [input_hidden | hidden | last_hidden]
    x = jnp.concatenate([input_hidden, hidden, last_hidden], axis=-1).astype(f32)   # (N, 3H)
    xT = jnp.zeros((FP, N_pad), f32).at[:F, :N].set(x.T)                            # feature-major

    lh_p = jnp.zeros((N_pad, HP), f32).at[:N, :H].set(last_hidden.astype(f32))

    src = edge_index[0].astype(jnp.int32)
    dst = edge_index[1].astype(jnp.int32)
    src3 = jnp.zeros((E_pad,), jnp.int32).at[:E].set(src).reshape(num_tiles, 1, TE)
    dst3 = jnp.full((E_pad,), N_pad, jnp.int32).at[:E].set(dst).reshape(num_tiles, 1, TE)
    ew3 = jnp.zeros((E_pad,), f32).at[:E].set(edge_weight.astype(f32)).reshape(num_tiles, 1, TE)

    # parameters in lane-dense padded layout
    w_ew_col = jnp.zeros((FP, 1), f32).at[:F, :].set(params['w_ew'].astype(f32).T)   # (FP, 1)
    b_ew_col = jnp.zeros((FP, 1), f32).at[:F, :].set(params['b_ew'].astype(f32).T)   # (FP, 1)
    w_ih_p = jnp.zeros((FP, 3 * HP), f32).at[:F, :].set(
        _pad_cols_grouped(params['w_ih'], H, HP, 3))                                  # (FP, 3HP)
    w_hh_p = jnp.zeros((HP, 3 * HP), f32).at[:H, :].set(
        _pad_cols_grouped(params['w_hh'], H, HP, 3))                                  # (HP, 3HP)
    b_ih_p = _pad_cols_grouped(params['b_ih'], H, HP, 3)                              # (1, 3HP)
    b_hh_p = _pad_cols_grouped(params['b_hh'], H, HP, 3)                              # (1, 3HP)
    gamma_p = _pad_cols_grouped(params['gamma'], H, HP, 1)                            # (1, HP)
    beta_p = _pad_cols_grouped(params['beta'], H, HP, 1)                              # (1, HP)

    kernel = functools.partial(_fused_processor_kernel, hidden_dim=H, hp=HP)

    flops = int(4 * FP * N_pad * E_pad            # one-hot gather + scatter matmuls
                + 4 * FP * E_pad                   # edge-message VPU work
                + 2 * N_pad * 3 * HP * (FP + HP)   # GRU matmuls
                + 12 * N_pad * HP)                 # gates + layernorm VPU work
    bytes_accessed = int(4 * (3 * E_pad
                              + FP * N_pad + 2 * N_pad * HP
                              + FP * (3 * HP + 2)
                              + HP * 3 * HP + 2 * 3 * HP + 2 * HP))

    out_pad = pl.pallas_call(
        kernel,
        out_shape=jax.ShapeDtypeStruct((N_pad, HP), f32),
        grid=(num_tiles,),
        in_specs=[
            pl.BlockSpec((1, 1, TE), lambda t: (t, 0, 0)),    # src ids (streamed per tile)
            pl.BlockSpec((1, 1, TE), lambda t: (t, 0, 0)),    # dst ids
            pl.BlockSpec((1, 1, TE), lambda t: (t, 0, 0)),    # edge weights
            pl.BlockSpec((FP, N_pad), lambda t: (0, 0)),      # xT (resident)
            pl.BlockSpec((FP, 1), lambda t: (0, 0)),          # w_ew
            pl.BlockSpec((FP, 1), lambda t: (0, 0)),          # b_ew
            pl.BlockSpec((FP, 3 * HP), lambda t: (0, 0)),     # w_ih
            pl.BlockSpec((1, 3 * HP), lambda t: (0, 0)),      # b_ih
            pl.BlockSpec((HP, 3 * HP), lambda t: (0, 0)),     # w_hh
            pl.BlockSpec((1, 3 * HP), lambda t: (0, 0)),      # b_hh
            pl.BlockSpec((1, HP), lambda t: (0, 0)),          # gamma
            pl.BlockSpec((1, HP), lambda t: (0, 0)),          # beta
            pl.BlockSpec((N_pad, HP), lambda t: (0, 0)),      # last_hidden (resident)
        ],
        out_specs=pl.BlockSpec((N_pad, HP), lambda t: (0, 0)),
        scratch_shapes=[pltpu.VMEM((N_pad, FP), f32)],        # resident node accumulator
        compiler_params=pltpu.CompilerParams(
            dimension_semantics=("arbitrary",),               # sequential accumulation over edge tiles
            vmem_limit_bytes=48 * 1024 * 1024,                # safe on v7x (64 MiB VMEM) and below
        ),
        cost_estimate=pl.CostEstimate(flops=flops,
                                      transcendentals=int(4 * N_pad * HP),
                                      bytes_accessed=bytes_accessed),
    )(src3, dst3, ew3, xT, w_ew_col, b_ew_col,
      w_ih_p, b_ih_p, w_hh_p, b_hh_p, gamma_p, beta_p, lh_p)

    return out_pad[:N, :H]


# -----------------------------------------------------------------------------
# Pure-JAX reference (same forward) for correctness check
# -----------------------------------------------------------------------------
def _reference(input_hidden, hidden, last_hidden, edge_index, edge_weight, params):
    H = hidden.shape[1]
    x = jnp.concatenate([input_hidden, hidden, last_hidden], axis=-1)
    src, dst = edge_index[0], edge_index[1]
    ew_scaled = edge_weight[:, None] @ params['w_ew'] + params['b_ew']
    msg = jnp.maximum(x[src] + ew_scaled, 0.0)
    agg = jnp.zeros_like(x).at[dst].add(msg)
    gx = agg @ params['w_ih'] + params['b_ih']
    gh = last_hidden @ params['w_hh'] + params['b_hh']
    r = jax.nn.sigmoid(gx[:, :H] + gh[:, :H])
    z = jax.nn.sigmoid(gx[:, H:2 * H] + gh[:, H:2 * H])
    n = jnp.tanh(gx[:, 2 * H:] + r * gh[:, 2 * H:])
    h_new = (1.0 - z) * n + z * last_hidden
    mean = jnp.mean(h_new, axis=-1, keepdims=True)
    var = jnp.mean((h_new - mean) ** 2, axis=-1, keepdims=True)
    return (h_new - mean) / jnp.sqrt(var + 1e-5) * params['gamma'] + params['beta']


if __name__ == "__main__":
    key = jax.random.PRNGKey(0)
    N, E, H = 8, 16, 32            # nodes, edges, HIDDEN_DIM
    F = 3 * H                      # processor_input (PROCESSOR_USE_LAST_HIDDEN=True)

    ks = jax.random.split(key, 12)
    input_hidden = jax.random.normal(ks[0], (N, H), jnp.float32)
    hidden       = jax.random.normal(ks[1], (N, H), jnp.float32)
    last_hidden  = jax.random.normal(ks[2], (N, H), jnp.float32)
    edge_index   = jax.random.randint(ks[3], (2, E), 0, N, jnp.int32)
    edge_weight  = jax.random.uniform(ks[4], (E,), jnp.float32)

    # Deterministic parameter init (shapes from the torch module __init__, stored transposed).
    params = {
        # edge_weight_scaler = nn.Linear(1, F)
        'w_ew': 0.1 * jax.random.normal(ks[5], (1, F), jnp.float32),
        'b_ew': 0.1 * jax.random.normal(ks[6], (1, F), jnp.float32),
        # GRUCell(F, H)
        'w_ih': 0.1 * jax.random.normal(ks[7], (F, 3 * H), jnp.float32),
        'b_ih': 0.1 * jax.random.normal(ks[8], (1, 3 * H), jnp.float32),
        'w_hh': 0.1 * jax.random.normal(ks[9], (H, 3 * H), jnp.float32),
        'b_hh': 0.1 * jax.random.normal(ks[10], (1, 3 * H), jnp.float32),
        # pyg LayerNorm(H, mode='node')
        'gamma': jnp.ones((1, H), jnp.float32),
        'beta': jnp.zeros((1, H), jnp.float32),
    }

    out = processor_forward(input_hidden, hidden, last_hidden,
                            edge_index, edge_weight, params)
    out = jax.block_until_ready(out)

    ref = _reference(input_hidden, hidden, last_hidden,
                     edge_index, edge_weight, params)
    assert out.shape == (N, H)
    max_diff = float(jnp.max(jnp.abs(out - ref)))
    assert jnp.allclose(out, ref, atol=2e-3, rtol=2e-3), f"mismatch vs reference (max diff {max_diff})"

    print("KERNEL_OK")
</pallas_src>

<mosaic_0001>
module attributes {stable_mosaic.version = 11 : i64} {
  func.func @_fused_processor_kernel(%arg0: i32, %arg1: memref<1x1x128xi32, #tpu.memory_space<vmem>>, %arg2: memref<1x1x128xi32, #tpu.memory_space<vmem>>, %arg3: memref<1x1x128xf32, #tpu.memory_space<vmem>>, %arg4: memref<128x8xf32, #tpu.memory_space<vmem>>, %arg5: memref<128x1xf32, #tpu.memory_space<vmem>>, %arg6: memref<128x1xf32, #tpu.memory_space<vmem>>, %arg7: memref<128x384xf32, #tpu.memory_space<vmem>>, %arg8: memref<1x384xf32, #tpu.memory_space<vmem>>, %arg9: memref<128x384xf32, #tpu.memory_space<vmem>>, %arg10: memref<1x384xf32, #tpu.memory_space<vmem>>, %arg11: memref<1x128xf32, #tpu.memory_space<vmem>>, %arg12: memref<1x128xf32, #tpu.memory_space<vmem>>, %arg13: memref<8x128xf32, #tpu.memory_space<vmem>>, %arg14: memref<8x128xf32, #tpu.memory_space<vmem>>, %arg15: memref<8x128xf32, #tpu.memory_space<vmem>>) attributes {dimension_semantics = [#tpu.dimension_semantics<arbitrary>], iteration_bounds = array<i64: 1>, scalar_prefetch = 0 : i64, scratch_operands = 1 : i64, tpu.core_type = #tpu.core_type<tc>, window_params = [{transform_indices = @transform_0, window_bounds = array<i64: 1, 1, 128>}, {transform_indices = @transform_1, window_bounds = array<i64: 1, 1, 128>}, {transform_indices = @transform_2, window_bounds = array<i64: 1, 1, 128>}, {pipeline_mode = #tpu.pipeline_mode<synchronous>, transform_indices = @transform_3, window_bounds = array<i64: 128, 8>}, {pipeline_mode = #tpu.pipeline_mode<synchronous>, transform_indices = @transform_4, window_bounds = array<i64: 128, 1>}, {pipeline_mode = #tpu.pipeline_mode<synchronous>, transform_indices = @transform_5, window_bounds = array<i64: 128, 1>}, {pipeline_mode = #tpu.pipeline_mode<synchronous>, transform_indices = @transform_6, window_bounds = array<i64: 128, 384>}, {pipeline_mode = #tpu.pipeline_mode<synchronous>, transform_indices = @transform_7, window_bounds = array<i64: 1, 384>}, {pipeline_mode = #tpu.pipeline_mode<synchronous>, transform_indices = @transform_8, window_bounds = array<i64: 128, 384>}, {pipeline_mode = #tpu.pipeline_mode<synchronous>, transform_indices = @transform_9, window_bounds = array<i64: 1, 384>}, {pipeline_mode = #tpu.pipeline_mode<synchronous>, transform_indices = @transform_10, window_bounds = array<i64: 1, 128>}, {pipeline_mode = #tpu.pipeline_mode<synchronous>, transform_indices = @transform_11, window_bounds = array<i64: 1, 128>}, {pipeline_mode = #tpu.pipeline_mode<synchronous>, transform_indices = @transform_12, window_bounds = array<i64: 8, 128>}, {pipeline_mode = #tpu.pipeline_mode<synchronous>, transform_indices = @transform_13, window_bounds = array<i64: 8, 128>}]} {
    %c0_i32 = arith.constant 0 : i32
    %0 = arith.cmpi eq, %arg0, %c0_i32 : i32
    %1 = arith.extui %0 : i1 to i32
    %c0_i32_0 = arith.constant 0 : i32
    %2 = arith.cmpi ne, %1, %c0_i32_0 : i32
    scf.if %2 {
      %cst_23 = arith.constant 0.000000e+00 : f32
      %37 = vector.broadcast %cst_23 : f32 to vector<8x128xf32>
      %c0_24 = arith.constant 0 : index
      %c0_25 = arith.constant 0 : index
      %38 = vector.load %arg15[%c0_24, %c0_25] : memref<8x128xf32, #tpu.memory_space<vmem>>, vector<8x128xf32>
      tpu.vector_store %arg15[%c0_24, %c0_25], %37 {strides = array<i32>} : memref<8x128xf32, #tpu.memory_space<vmem>>, vector<8x128xf32>,
    } else {
    }
    %c0 = arith.constant 0 : index
    %c0_1 = arith.constant 0 : index
    %c0_2 = arith.constant 0 : index
    %3 = vector.load %arg1[%c0, %c0_1, %c0_2] : memref<1x1x128xi32, #tpu.memory_space<vmem>>, vector<1x1x128xi32>
    %4 = vector.shape_cast %3 : vector<1x1x128xi32> to vector<1x128xi32>
    %c0_3 = arith.constant 0 : index
    %c0_4 = arith.constant 0 : index
    %c0_5 = arith.constant 0 : index
    %5 = vector.load %arg2[%c0_3, %c0_4, %c0_5] : memref<1x1x128xi32, #tpu.memory_space<vmem>>, vector<1x1x128xi32>
    %6 = vector.shape_cast %5 : vector<1x1x128xi32> to vector<1x128xi32>
    %c0_6 = arith.constant 0 : index
    %c0_7 = arith.constant 0 : index
    %c0_8 = arith.constant 0 : index
    %7 = vector.load %arg3[%c0_6, %c0_7, %c0_8] : memref<1x1x128xf32, #tpu.memory_space<vmem>>, vector<1x1x128xf32>
    %8 = vector.shape_cast %7 : vector<1x1x128xf32> to vector<1x128xf32>
    %9 = tpu.iota {dimensions = array<i32: 0>} : vector<8x128xi32>
    %10 = vector.broadcast %4 : vector<1x128xi32> to vector<8x128xi32>
    %11 = arith.cmpi eq, %9, %10 : vector<8x128xi32>
    %12 = arith.extui %11 : vector<8x128xi1> to vector<8x128xi32>
    %13 = arith.sitofp %12 : vector<8x128xi32> to vector<8x128xf32>
    %14 = vector.broadcast %6 : vector<1x128xi32> to vector<8x128xi32>
    %15 = arith.cmpi eq, %9, %14 : vector<8x128xi32>
    %16 = arith.extui %15 : vector<8x128xi1> to vector<8x128xi32>
    %17 = arith.sitofp %16 : vector<8x128xi32> to vector<8x128xf32>
    %c0_9 = arith.constant 0 : index
    %c0_10 = arith.constant 0 : index
    %18 = vector.load %arg4[%c0_9, %c0_10] : memref<128x8xf32, #tpu.memory_space<vmem>>, vector<128x8xf32>
    %cst = arith.constant dense<0.000000e+00> : vector<128x128xf32>
    %19 = tpu.matmul %18, %13, %cst {dimension_numbers = #tpu.dot_dimension_numbers<[1], [0], [0], [1], [0, 0, 1, 1], [], []>} : vector<128x8xf32>, vector<8x128xf32>, vector<128x128xf32> -> vector<128x128xf32>
    %c0_11 = arith.constant 0 : index
    %c0_12 = arith.constant 0 : index
    %20 = vector.load %arg5[%c0_11, %c0_12] : memref<128x1xf32, #tpu.memory_space<vmem>>, vector<128x1xf32>
    %21 = vector.broadcast %20 : vector<128x1xf32> to vector<128x128xf32>
    %22 = vector.broadcast %8 : vector<1x128xf32> to vector<128x128xf32>
    %23 = arith.mulf %21, %22 : vector<128x128xf32>
    %24 = arith.addf %19, %23 : vector<128x128xf32>
    %c0_13 = arith.constant 0 : index
    %c0_14 = arith.constant 0 : index
    %25 = vector.load %arg6[%c0_13, %c0_14] : memref<128x1xf32, #tpu.memory_space<vmem>>, vector<128x1xf32>
    %26 = vector.broadcast %25 : vector<128x1xf32> to vector<128x128xf32>
    %27 = arith.addf %24, %26 : vector<128x128xf32>
    %cst_15 = arith.constant 0.000000e+00 : f32
    %28 = vector.broadcast %cst_15 : f32 to vector<128x128xf32>
    %29 = arith.maximumf %27, %28 : vector<128x128xf32>
    %c0_16 = arith.constant 0 : index
    %c0_17 = arith.constant 0 : index
    %30 = vector.load %arg15[%c0_16, %c0_17] : memref<8x128xf32, #tpu.memory_space<vmem>>, vector<8x128xf32>
    %cst_18 = arith.constant dense<0.000000e+00> : vector<8x128xf32>
    %31 = tpu.matmul %17, %29, %cst_18 {dimension_numbers = #tpu.dot_dimension_numbers<[1], [1], [0], [0], [0, 0, 1, 0], [], []>} : vector<8x128xf32>, vector<128x128xf32>, vector<8x128xf32> -> vector<8x128xf32>
    %32 = arith.addf %30, %31 : vector<8x128xf32>
    %c0_19 = arith.constant 0 : index
    %c0_20 = arith.constant 0 : index
    %33 = vector.load %arg15[%c0_19, %c0_20] : memref<8x128xf32, #tpu.memory_space<vmem>>, vector<8x128xf32>
    tpu.vector_store %arg15[%c0_19, %c0_20], %32 {strides = array<i32>} : memref<8x128xf32, #tpu.memory_space<vmem>>, vector<8x128xf32>,
    %c0_i32_21 = arith.constant 0 : i32
    %34 = arith.cmpi eq, %arg0, %c0_i32_21 : i32
    %35 = arith.extui %34 : i1 to i32
    %c0_i32_22 = arith.constant 0 : i32
    %36 = arith.cmpi ne, %35, %c0_i32_22 : i32
    scf.if %36 {
      %c0_23 = arith.constant 0 : index
      %c0_24 = arith.constant 0 : index
      %37 = vector.load %arg15[%c0_23, %c0_24] : memref<8x128xf32, #tpu.memory_space<vmem>>, vector<8x128xf32>
      %c0_25 = arith.constant 0 : index
      %c0_26 = arith.constant 0 : index
      %38 = vector.load %arg13[%c0_25, %c0_26] : memref<8x128xf32, #tpu.memory_space<vmem>>, vector<8x128xf32>
      %c0_27 = arith.constant 0 : index
      %c0_28 = arith.constant 0 : index
      %39 = vector.load %arg7[%c0_27, %c0_28] : memref<128x384xf32, #tpu.memory_space<vmem>>, vector<128x384xf32>
      %cst_29 = arith.constant dense<0.000000e+00> : vector<8x384xf32>
      %40 = tpu.matmul %37, %39, %cst_29 {dimension_numbers = #tpu.dot_dimension_numbers<[1], [0], [0], [1], [0, 0, 1, 1], [], []>} : vector<8x128xf32>, vector<128x384xf32>, vector<8x384xf32> -> vector<8x384xf32>
      %c0_30 = arith.constant 0 : index
      %c0_31 = arith.constant 0 : index
      %41 = vector.load %arg8[%c0_30, %c0_31] : memref<1x384xf32, #tpu.memory_space<vmem>>, vector<1x384xf32>
      %42 = vector.broadcast %41 : vector<1x384xf32> to vector<8x384xf32>
      %43 = arith.addf %40, %42 : vector<8x384xf32>
      %c0_32 = arith.constant 0 : index
      %c0_33 = arith.constant 0 : index
      %44 = vector.load %arg9[%c0_32, %c0_33] : memref<128x384xf32, #tpu.memory_space<vmem>>, vector<128x384xf32>
      %cst_34 = arith.constant dense<0.000000e+00> : vector<8x384xf32>
      %45 = tpu.matmul %38, %44, %cst_34 {dimension_numbers = #tpu.dot_dimension_numbers<[1], [0], [0], [1], [0, 0, 1, 1], [], []>} : vector<8x128xf32>, vector<128x384xf32>, vector<8x384xf32> -> vector<8x384xf32>
      %c0_35 = arith.constant 0 : index
      %c0_36 = arith.constant 0 : index
      %46 = vector.load %arg10[%c0_35, %c0_36] : memref<1x384xf32, #tpu.memory_space<vmem>>, vector<1x384xf32>
      %47 = vector.broadcast %46 : vector<1x384xf32> to vector<8x384xf32>
      %48 = arith.addf %45, %47 : vector<8x384xf32>
      %49 = vector.extract_strided_slice %43 {offsets = [0, 0], sizes = [8, 128], strides = [1, 1]} : vector<8x384xf32> to vector<8x128xf32>
      %50 = vector.extract_strided_slice %48 {offsets = [0, 0], sizes = [8, 128], strides = [1, 1]} : vector<8x384xf32> to vector<8x128xf32>
      %51 = arith.addf %49, %50 : vector<8x128xf32>
      %52 = arith.negf %51 : vector<8x128xf32>
      %53 = math.exp %52 : vector<8x128xf32>
      %cst_37 = arith.constant 1.000000e+00 : f32
      %54 = vector.broadcast %cst_37 : f32 to vector<8x128xf32>
      %55 = arith.addf %54, %53 : vector<8x128xf32>
      %56 = arith.divf %54, %55 : vector<8x128xf32>
      %57 = vector.extract_strided_slice %43 {offsets = [0, 128], sizes = [8, 128], strides = [1, 1]} : vector<8x384xf32> to vector<8x128xf32>
      %58 = vector.extract_strided_slice %48 {offsets = [0, 128], sizes = [8, 128], strides = [1, 1]} : vector<8x384xf32> to vector<8x128xf32>
      %59 = arith.addf %57, %58 : vector<8x128xf32>
      %60 = arith.negf %59 : vector<8x128xf32>
      %61 = math.exp %60 : vector<8x128xf32>
      %cst_38 = arith.constant 1.000000e+00 : f32
      %62 = vector.broadcast %cst_38 : f32 to vector<8x128xf32>
      %63 = arith.addf %62, %61 : vector<8x128xf32>
      %64 = arith.divf %62, %63 : vector<8x128xf32>
      %65 = vector.extract_strided_slice %43 {offsets = [0, 256], sizes = [8, 128], strides = [1, 1]} : vector<8x384xf32> to vector<8x128xf32>
      %66 = vector.extract_strided_slice %48 {offsets = [0, 256], sizes = [8, 128], strides = [1, 1]} : vector<8x384xf32> to vector<8x128xf32>
      %67 = arith.mulf %56, %66 : vector<8x128xf32>
      %68 = arith.addf %65, %67 : vector<8x128xf32>
      %69 = math.tanh %68 : vector<8x128xf32>
      %cst_39 = arith.constant 1.000000e+00 : f32
      %70 = vector.broadcast %cst_39 : f32 to vector<8x128xf32>
      %71 = arith.subf %70, %64 : vector<8x128xf32>
      %72 = arith.mulf %71, %69 : vector<8x128xf32>
      %73 = arith.mulf %64, %38 : vector<8x128xf32>
      %74 = arith.addf %72, %73 : vector<8x128xf32>
      %75 = tpu.iota {dimensions = array<i32: 1>} : vector<1x128xi32>
      %c32_i32 = arith.constant 32 : i32
      %76 = vector.broadcast %c32_i32 : i32 to vector<1x128xi32>
      %77 = arith.cmpi slt, %75, %76 : vector<1x128xi32>
      %78 = arith.extui %77 : vector<1x128xi1> to vector<1x128xi32>
      %79 = arith.sitofp %78 : vector<1x128xi32> to vector<1x128xf32>
      %80 = vector.broadcast %79 : vector<1x128xf32> to vector<8x128xf32>
      %81 = arith.mulf %74, %80 : vector<8x128xf32>
      %cst_40 = arith.constant dense<0.000000e+00> : vector<8xf32>
      %82 = vector.multi_reduction <add>, %81, %cst_40 [1] : vector<8x128xf32> to vector<8xf32>
      %83 = vector.shape_cast %82 : vector<8xf32> to vector<8x1xf32>
      %cst_41 = arith.constant 3.125000e-02 : f32
      %84 = vector.broadcast %cst_41 : f32 to vector<8x1xf32>
      %85 = arith.mulf %83, %84 : vector<8x1xf32>
      %86 = vector.broadcast %85 : vector<8x1xf32> to vector<8x128xf32>
      %87 = arith.subf %74, %86 : vector<8x128xf32>
      %88 = vector.broadcast %79 : vector<1x128xf32> to vector<8x128xf32>
      %89 = arith.mulf %87, %88 : vector<8x128xf32>
      %90 = arith.mulf %89, %89 : vector<8x128xf32>
      %cst_42 = arith.constant dense<0.000000e+00> : vector<8xf32>
      %91 = vector.multi_reduction <add>, %90, %cst_42 [1] : vector<8x128xf32> to vector<8xf32>
      %92 = vector.shape_cast %91 : vector<8xf32> to vector<8x1xf32>
      %cst_43 = arith.constant 3.125000e-02 : f32
      %93 = vector.broadcast %cst_43 : f32 to vector<8x1xf32>
      %94 = arith.mulf %92, %93 : vector<8x1xf32>
      %cst_44 = arith.constant 9.99999974E-6 : f32
      %95 = vector.broadcast %cst_44 : f32 to vector<8x1xf32>
      %96 = arith.addf %94, %95 : vector<8x1xf32>
      %97 = math.rsqrt %96 : vector<8x1xf32>
      %98 = vector.broadcast %97 : vector<8x1xf32> to vector<8x128xf32>
      %99 = arith.mulf %89, %98 : vector<8x128xf32>
      %c0_45 = arith.constant 0 : index
      %c0_46 = arith.constant 0 : index
      %100 = vector.load %arg11[%c0_45, %c0_46] : memref<1x128xf32, #tpu.memory_space<vmem>>, vector<1x128xf32>
      %101 = vector.broadcast %100 : vector<1x128xf32> to vector<8x128xf32>
      %102 = arith.mulf %99, %101 : vector<8x128xf32>
      %c0_47 = arith.constant 0 : index
      %c0_48 = arith.constant 0 : index
      %103 = vector.load %arg12[%c0_47, %c0_48] : memref<1x128xf32, #tpu.memory_space<vmem>>, vector<1x128xf32>
      %104 = vector.broadcast %103 : vector<1x128xf32> to vector<8x128xf32>
      %105 = arith.addf %102, %104 : vector<8x128xf32>
      %c0_49 = arith.constant 0 : index
      %c0_50 = arith.constant 0 : index
      %106 = vector.load %arg14[%c0_49, %c0_50] : memref<8x128xf32, #tpu.memory_space<vmem>>, vector<8x128xf32>
      tpu.vector_store %arg14[%c0_49, %c0_50], %105 {strides = array<i32>} : memref<8x128xf32, #tpu.memory_space<vmem>>, vector<8x128xf32>,
    } else {
    }
    return
  }
  func.func @transform_0(%arg0: i32) -> (i32, i32, i32) {
    %c0_i32 = arith.constant 0 : i32
    %c0_i32_0 = arith.constant 0 : i32
    %c0_i32_1 = arith.constant 0 : i32
    return %arg0, %c0_i32, %c0_i32_0 : i32, i32, i32
  }
  func.func @transform_1(%arg0: i32) -> (i32, i32, i32) {
    %c0_i32 = arith.constant 0 : i32
    %c0_i32_0 = arith.constant 0 : i32
    %c0_i32_1 = arith.constant 0 : i32
    return %arg0, %c0_i32, %c0_i32_0 : i32, i32, i32
  }
  func.func @transform_2(%arg0: i32) -> (i32, i32, i32) {
    %c0_i32 = arith.constant 0 : i32
    %c0_i32_0 = arith.constant 0 : i32
    %c0_i32_1 = arith.constant 0 : i32
    return %arg0, %c0_i32, %c0_i32_0 : i32, i32, i32
  }
  func.func @transform_3(%arg0: i32) -> (i32, i32) {
    %c0_i32 = arith.constant 0 : i32
    %c0_i32_0 = arith.constant 0 : i32
    %c0_i32_1 = arith.constant 0 : i32
    return %c0_i32, %c0_i32_0 : i32, i32
  }
  func.func @transform_4(%arg0: i32) -> (i32, i32) {
    %c0_i32 = arith.constant 0 : i32
    %c0_i32_0 = arith.constant 0 : i32
    %c0_i32_1 = arith.constant 0 : i32
    return %c0_i32, %c0_i32_0 : i32, i32
  }
  func.func @transform_5(%arg0: i32) -> (i32, i32) {
    %c0_i32 = arith.constant 0 : i32
    %c0_i32_0 = arith.constant 0 : i32
    %c0_i32_1 = arith.constant 0 : i32
    return %c0_i32, %c0_i32_0 : i32, i32
  }
  func.func @transform_6(%arg0: i32) -> (i32, i32) {
    %c0_i32 = arith.constant 0 : i32
    %c0_i32_0 = arith.constant 0 : i32
    %c0_i32_1 = arith.constant 0 : i32
    return %c0_i32, %c0_i32_0 : i32, i32
  }
  func.func @transform_7(%arg0: i32) -> (i32, i32) {
    %c0_i32 = arith.constant 0 : i32
    %c0_i32_0 = arith.constant 0 : i32
    %c0_i32_1 = arith.constant 0 : i32
    return %c0_i32, %c0_i32_0 : i32, i32
  }
  func.func @transform_8(%arg0: i32) -> (i32, i32) {
    %c0_i32 = arith.constant 0 : i32
    %c0_i32_0 = arith.constant 0 : i32
    %c0_i32_1 = arith.constant 0 : i32
    return %c0_i32, %c0_i32_0 : i32, i32
  }
  func.func @transform_9(%arg0: i32) -> (i32, i32) {
    %c0_i32 = arith.constant 0 : i32
    %c0_i32_0 = arith.constant 0 : i32
    %c0_i32_1 = arith.constant 0 : i32
    return %c0_i32, %c0_i32_0 : i32, i32
  }
  func.func @transform_10(%arg0: i32) -> (i32, i32) {
    %c0_i32 = arith.constant 0 : i32
    %c0_i32_0 = arith.constant 0 : i32
    %c0_i32_1 = arith.constant 0 : i32
    return %c0_i32, %c0_i32_0 : i32, i32
  }
  func.func @transform_11(%arg0: i32) -> (i32, i32) {
    %c0_i32 = arith.constant 0 : i32
    %c0_i32_0 = arith.constant 0 : i32
    %c0_i32_1 = arith.constant 0 : i32
    return %c0_i32, %c0_i32_0 : i32, i32
  }
  func.func @transform_12(%arg0: i32) -> (i32, i32) {
    %c0_i32 = arith.constant 0 : i32
    %c0_i32_0 = arith.constant 0 : i32
    %c0_i32_1 = arith.constant 0 : i32
    return %c0_i32, %c0_i32_0 : i32, i32
  }
  func.func @transform_13(%arg0: i32) -> (i32, i32) {
    %c0_i32 = arith.constant 0 : i32
    %c0_i32_0 = arith.constant 0 : i32
    %c0_i32_1 = arith.constant 0 : i32
    return %c0_i32, %c0_i32_0 : i32, i32
  }
}

</mosaic_0001>

<llo_original>
// kernel: tpu_custom_call.1
$region0: #{tpu_custom_call.1}
  #allocation0 [shape = 'u32[]', space=smem, size = 0x4, offset = 0x4, fixed_abs, tag = 'smem constant byte address 0x4 - core index']
  #allocation1 [shape = 'u32[144,128]{1,0:T(1,128)}', space=vmem, size = 0x12000, scoped, tag = 'internal scratch']
  #allocation2 [shape = 'f32[8,128]{1,0:T(8,128)}', space=vmem, size = 0x1000, scoped, tag = 'scratch operand']
  %s0 = inlined_call_operand.vmem [shape: s32[1,1,128], index: 0, kind: input, shape index: {}]
  %s1 = inlined_call_operand.vmem [shape: s32[1,1,128], index: 1, kind: input, shape index: {}]
  %s2 = inlined_call_operand.vmem [shape: f32[1,1,128], index: 2, kind: input, shape index: {}]
  %s3 = inlined_call_operand.vmem [shape: f32[128,8], index: 3, kind: input, shape index: {}]
  %s4 = inlined_call_operand.vmem [shape: f32[128,1], index: 4, kind: input, shape index: {}]
  %s5 = inlined_call_operand.vmem [shape: f32[128,1], index: 5, kind: input, shape index: {}]
  %s6 = inlined_call_operand.vmem [shape: f32[128,384], index: 6, kind: input, shape index: {}]
  %s7 = inlined_call_operand.vmem [shape: f32[1,384], index: 7, kind: input, shape index: {}]
  %s8 = inlined_call_operand.hbm [shape: f32[128,384], index: 8, kind: input, shape index: {}]
  %s9 = inlined_call_operand.vmem [shape: f32[1,384], index: 9, kind: input, shape index: {}]
  %s10 = inlined_call_operand.vmem [shape: f32[1,128], index: 10, kind: input, shape index: {}]
  %s11 = inlined_call_operand.vmem [shape: f32[1,128], index: 11, kind: input, shape index: {}]
  %s12 = inlined_call_operand.vmem [shape: f32[8,128], index: 12, kind: input, shape index: {}]
  %s13 = inlined_call_operand.hbm [shape: f32[8,128], index: 13, kind: output, shape index: {}]
  %s14 = sld [smem:[#allocation0]]
  $region74: #{tpu_custom_call.1} parent=0
    _
  %s16 = ssub.s32 1, %s14
  %s17 = scalar_select 0, %s16, %s14
  $region1: #{tpu_custom_call.1} parent=0
    #allocation3 [shape = 'u8[196608]{0}', space=vmem, size = 0x30000, scoped, tag = 'input window, operand 8, single buffered']
    #allocation4 [shape = 's32[1]{0}', space=sflag, size = 0x4, scoped, tag = 'scoped memory for tpu_custom_call.1']
    #allocation5 [shape = 's32[1]{0}', space=sflag, size = 0x4, scoped, tag = 'scoped memory for tpu_custom_call.1']
    #allocation6 [shape = 'u8[4096]{0}', space=vmem, size = 0x1000, scoped, tag = 'output window, operand 0, single buffered']
    %18 = vsyncpa [#allocation4], 0
    %19 = vsyncpa [#allocation5], 0
    // Predicated region
    $region2: #{tpu_custom_call.1} parent=1 // pred_check
      _
    $region3: #{tpu_custom_call.1} parent=1 // pred_check_branch
      %21 = sbr.rel (0) target = $region5
    $region4: #{tpu_custom_call.1} parent=1 // pred_region
      _
    $region5: #{tpu_custom_call.1} parent=1 // pred_fallthru
      _
    // Predicated region
    $region6: #{tpu_custom_call.1} parent=1 // pred_check
      _
    $region7: #{tpu_custom_call.1} parent=1 // pred_check_branch
      %23 = sbr.rel (0) target = $region9
    $region8: #{tpu_custom_call.1} parent=1 // pred_region
      _
    $region9: #{tpu_custom_call.1} parent=1 // pred_fallthru
      _
    // Predicated region
    $region10: #{tpu_custom_call.1} parent=1 // pred_check
      _
    $region11: #{tpu_custom_call.1} parent=1 // pred_check_branch
      %25 = sbr.rel (0) target = $region13
    $region12: #{tpu_custom_call.1} parent=1 // pred_region
      _
    $region13: #{tpu_custom_call.1} parent=1 // pred_fallthru
      _
    // Predicated region
    $region14: #{tpu_custom_call.1} parent=1 // pred_check
      _
    $region15: #{tpu_custom_call.1} parent=1 // pred_check_branch
      %27 = sbr.rel (0) target = $region17
    $region16: #{tpu_custom_call.1} parent=1 // pred_region
      _
    $region17: #{tpu_custom_call.1} parent=1 // pred_fallthru
      _
    // Predicated region
    $region18: #{tpu_custom_call.1} parent=1 // pred_check
      _
    $region19: #{tpu_custom_call.1} parent=1 // pred_check_branch
      %29 = sbr.rel (0) target = $region21
    $region20: #{tpu_custom_call.1} parent=1 // pred_region
      _
    $region21: #{tpu_custom_call.1} parent=1 // pred_fallthru
      _
    // Predicated region
    $region22: #{tpu_custom_call.1} parent=1 // pred_check
      _
    $region23: #{tpu_custom_call.1} parent=1 // pred_check_branch
      %31 = sbr.rel (0) target = $region25
    $region24: #{tpu_custom_call.1} parent=1 // pred_region
      _
    $region25: #{tpu_custom_call.1} parent=1 // pred_fallthru
      _
    // Predicated region
    $region26: #{tpu_custom_call.1} parent=1 // pred_check
      _
    $region27: #{tpu_custom_call.1} parent=1 // pred_check_branch
      %33 = sbr.rel (0) target = $region29
    $region28: #{tpu_custom_call.1} parent=1 // pred_region
      _
    $region29: #{tpu_custom_call.1} parent=1 // pred_fallthru
      _
    // Predicated region
    $region30: #{tpu_custom_call.1} parent=1 // pred_check
      _
    $region31: #{tpu_custom_call.1} parent=1 // pred_check_branch
      %35 = sbr.rel (0) target = $region33
    $region32: #{tpu_custom_call.1} parent=1 // pred_region
      _
    $region33: #{tpu_custom_call.1} parent=1 // pred_fallthru
      _
    // Predicated region
    $region34: #{tpu_custom_call.1} parent=1 // pred_check
      _
    $region35: #{tpu_custom_call.1} parent=1 // pred_check_branch
      %37 = sbr.rel (0) target = $region37
    $region36: #{tpu_custom_call.1} parent=1 // pred_region
      %s39 = ssub.s32 6144, 6144
      %40 = vsyncadd [#allocation4], %s39
      %s41 = sshll.u32 [#allocation3], 4
      %s42 = int_to_ptr.vmem [resolvable:$true] %s41
      %47 = dma.hbm_to_vmem [thread:$0]  %s8, 6144, %s42, [#allocation4], 384, 384, 24
    $region37: #{tpu_custom_call.1} parent=1 // pred_fallthru
      _
    // Predicated region
    $region38: #{tpu_custom_call.1} parent=1 // pred_check
      _
    $region39: #{tpu_custom_call.1} parent=1 // pred_check_branch
      %49 = sbr.rel (0) target = $region41
    $region40: #{tpu_custom_call.1} parent=1 // pred_region
      _
    $region41: #{tpu_custom_call.1} parent=1 // pred_fallthru
      _
    // Predicated region
    $region42: #{tpu_custom_call.1} parent=1 // pred_check
      _
    $region43: #{tpu_custom_call.1} parent=1 // pred_check_branch
      %51 = sbr.rel (0) target = $region45
    $region44: #{tpu_custom_call.1} parent=1 // pred_region
      _
    $region45: #{tpu_custom_call.1} parent=1 // pred_fallthru
      _
    // Predicated region
    $region46: #{tpu_custom_call.1} parent=1 // pred_check
      _
    $region47: #{tpu_custom_call.1} parent=1 // pred_check_branch
      %53 = sbr.rel (0) target = $region49
    $region48: #{tpu_custom_call.1} parent=1 // pred_region
      _
    $region49: #{tpu_custom_call.1} parent=1 // pred_fallthru
      _
    // Predicated region
    $region50: #{tpu_custom_call.1} parent=1 // pred_check
      _
    $region51: #{tpu_custom_call.1} parent=1 // pred_check_branch
      %55 = sbr.rel (0) target = $region53
    $region52: #{tpu_custom_call.1} parent=1 // pred_region
      _
    $region53: #{tpu_custom_call.1} parent=1 // pred_fallthru
      _
    // Predicated region
    $region54: #{tpu_custom_call.1} parent=1 // pred_check
      _
    $region55: #{tpu_custom_call.1} parent=1 // pred_check_branch
      %57 = sbr.rel (0) target = $region57
    $region56: #{tpu_custom_call.1} parent=1 // pred_region
      %58 = dma.done [#allocation4], 6144
    $region57: #{tpu_custom_call.1} parent=1 // pred_fallthru
      _
    %p59 = scmp.eq.s32.totalorder 0, 0
    // Predicated region
    $region58: #{tpu_custom_call.1} parent=1 // pred_check
      %p60 = pneg %p59
    $region59: #{tpu_custom_call.1} parent=1 // pred_check_branch
      %62 = sbr.rel (%p60) target = $region61
    $region60: #{tpu_custom_call.1} parent=1 // pred_region
      %63 = vst [vmem:[#allocation2] sm:$0xff] 0.0
    $region61: #{tpu_custom_call.1} parent=1 // pred_fallthru
      _
    %v64 = vld [vmem:[%s0] sm:$0x1]
    %v65 = vld [vmem:[%s1] sm:$0x1]
    %v66 = vld [vmem:[%s2] sm:$0x1]
    %v67 = vlaneseq
    %v68 = vshrl.u32 %v67, 7
    %v69 = vlaneseq
    %v70 = vshrl.u32 %v69, 7
    %v71 = vsub.s32 0, %v70
    %v72 = vrot.slane %v64, %v71
    %vm73 = vcmp.eq.s32.totalorder %v68, %v72
    %v74 = vsel %vm73, 1, 0
    %v75 = vcvt.s32.f32 %v74
    %v76 = vlaneseq
    %v77 = vshrl.u32 %v76, 7
    %v78 = vsub.s32 0, %v77
    %v79 = vrot.slane %v65, %v78
    %vm80 = vcmp.eq.s32.totalorder %v68, %v79
    %v81 = vsel %vm80, 1, 0
    %v82 = vcvt.s32.f32 %v81
    %v83 = vld [vmem:[%s3] sm:$0xff]
    %v84 = vld [vmem:[%s3 + $0x8] sm:$0xff]
    %v85 = vld [vmem:[%s3 + $0x10] sm:$0xff]
    %v86 = vld [vmem:[%s3 + $0x18] sm:$0xff]
    %v87 = vld [vmem:[%s3 + $0x20] sm:$0xff]
    %v88 = vld [vmem:[%s3 + $0x28] sm:$0xff]
    %v89 = vld [vmem:[%s3 + $0x30] sm:$0xff]
    %v90 = vld [vmem:[%s3 + $0x38] sm:$0xff]
    %v91 = vld [vmem:[%s3 + $0x40] sm:$0xff]
    %v92 = vld [vmem:[%s3 + $0x48] sm:$0xff]
    %v93 = vld [vmem:[%s3 + $0x50] sm:$0xff]
    %v94 = vld [vmem:[%s3 + $0x58] sm:$0xff]
    %v95 = vld [vmem:[%s3 + $0x60] sm:$0xff]
    %v96 = vld [vmem:[%s3 + $0x68] sm:$0xff]
    %v97 = vld [vmem:[%s3 + $0x70] sm:$0xff]
    %v98 = vld [vmem:[%s3 + $0x78] sm:$0xff]
    %v99 = vld [vmem:[%s4] sm:$0xff]
    %v100 = vld [vmem:[%s4 + $0x8] sm:$0xff]
    %v101 = vld [vmem:[%s4 + $0x10] sm:$0xff]
    %v102 = vld [vmem:[%s4 + $0x18] sm:$0xff]
    %v103 = vld [vmem:[%s4 + $0x20] sm:$0xff]
    %v104 = vld [vmem:[%s4 + $0x28] sm:$0xff]
    %v105 = vld [vmem:[%s4 + $0x30] sm:$0xff]
    %v106 = vld [vmem:[%s4 + $0x38] sm:$0xff]
    %v107 = vld [vmem:[%s4 + $0x40] sm:$0xff]
    %v108 = vld [vmem:[%s4 + $0x48] sm:$0xff]
    %v109 = vld [vmem:[%s4 + $0x50] sm:$0xff]
    %v110 = vld [vmem:[%s4 + $0x58] sm:$0xff]
    %v111 = vld [vmem:[%s4 + $0x60] sm:$0xff]
    %v112 = vld [vmem:[%s4 + $0x68] sm:$0xff]
    %v113 = vld [vmem:[%s4 + $0x70] sm:$0xff]
    %v114 = vld [vmem:[%s4 + $0x78] sm:$0xff]
    %116 = vset.pattern.permute.xlu0 0
    %117 = vperm.xlu0 %116, %v99
    %v118 = vpop.permute.xlu0 %117
    %121 = vset.pattern.permute.xlu0 0
    %122 = vperm.xlu0 %121, %v100
    %v123 = vpop.permute.xlu0 %122
    %126 = vset.pattern.permute.xlu0 0
    %127 = vperm.xlu0 %126, %v101
    %v128 = vpop.permute.xlu0 %127
    %131 = vset.pattern.permute.xlu0 0
    %132 = vperm.xlu0 %131, %v102
    %v133 = vpop.permute.xlu0 %132
    %136 = vset.pattern.permute.xlu0 0
    %137 = vperm.xlu0 %136, %v103
    %v138 = vpop.permute.xlu0 %137
    %141 = vset.pattern.permute.xlu0 0
    %142 = vperm.xlu0 %141, %v104
    %v143 = vpop.permute.xlu0 %142
    %146 = vset.pattern.permute.xlu0 0
    %147 = vperm.xlu0 %146, %v105
    %v148 = vpop.permute.xlu0 %147
    %151 = vset.pattern.permute.xlu0 0
    %152 = vperm.xlu0 %151, %v106
    %v153 = vpop.permute.xlu0 %152
    %156 = vset.pattern.permute.xlu0 0
    %157 = vperm.xlu0 %156, %v107
    %v158 = vpop.permute.xlu0 %157
    %161 = vset.pattern.permute.xlu0 0
    %162 = vperm.xlu0 %161, %v108
    %v163 = vpop.permute.xlu0 %162
    %166 = vset.pattern.permute.xlu0 0
    %167 = vperm.xlu0 %166, %v109
    %v168 = vpop.permute.xlu0 %167
    %171 = vset.pattern.permute.xlu0 0
    %172 = vperm.xlu0 %171, %v110
    %v173 = vpop.permute.xlu0 %172
    %176 = vset.pattern.permute.xlu0 0
    %177 = vperm.xlu0 %176, %v111
    %v178 = vpop.permute.xlu0 %177
    %181 = vset.pattern.permute.xlu0 0
    %182 = vperm.xlu0 %181, %v112
    %v183 = vpop.permute.xlu0 %182
    %186 = vset.pattern.permute.xlu0 0
    %187 = vperm.xlu0 %186, %v113
    %v188 = vpop.permute.xlu0 %187
    %191 = vset.pattern.permute.xlu0 0
    %192 = vperm.xlu0 %191, %v114
    %v193 = vpop.permute.xlu0 %192
    %v196 = vlaneseq
    %v197 = vshrl.u32 %v196, 7
    %v198 = vsub.s32 0, %v197
    %v199 = vrot.slane %v66, %v198
    %v201 = vmul.f32 %v118, %v199
    %v202 = vmul.f32 %v123, %v199
    %v203 = vmul.f32 %v128, %v199
    %v204 = vmul.f32 %v133, %v199
    %v205 = vmul.f32 %v138, %v199
    %v206 = vmul.f32 %v143, %v199
    %v207 = vmul.f32 %v148, %v199
    %v208 = vmul.f32 %v153, %v199
    %v209 = vmul.f32 %v158, %v199
    %v210 = vmul.f32 %v163, %v199
    %v211 = vmul.f32 %v168, %v199
    %v212 = vmul.f32 %v173, %v199
    %v213 = vmul.f32 %v178, %v199
    %v214 = vmul.f32 %v183, %v199
    %v215 = vmul.f32 %v188, %v199
    %v216 = vmul.f32 %v193, %v199
    %vm217 = vcmask 64512
    %v219 = vsel %vm217, %v83, 0
    %v222 = vsel %vm217, %v84, 0
    %v225 = vsel %vm217, %v85, 0
    %v228 = vsel %vm217, %v86, 0
    %v231 = vsel %vm217, %v87, 0
    %v234 = vsel %vm217, %v88, 0
    %v237 = vsel %vm217, %v89, 0
    %v240 = vsel %vm217, %v90, 0
    %v243 = vsel %vm217, %v91, 0
    %v246 = vsel %vm217, %v92, 0
    %v249 = vsel %vm217, %v93, 0
    %v252 = vsel %vm217, %v94, 0
    %v255 = vsel %vm217, %v95, 0
    %v258 = vsel %vm217, %v96, 0
    %v261 = vsel %vm217, %v97, 0
    %v264 = vsel %vm217, %v98, 0
    %266 = vmatprep.subr.mxu0 0.0
    %267 = vmatpush1.msra.mxu0 %v75
    %268 = vmatprep.subr.mxu0 0.0
    %269 = vmatpush1.msra.mxu0 0.0
    %270 = vmatprep.subr.mxu0 0.0
    %271 = vmatpush1.msra.mxu0 0.0
    %272 = vmatprep.subr.mxu0 0.0
    %273 = vmatpush1.msra.mxu0 0.0
    %274 = vmatprep.subr.mxu0 0.0
    %275 = vmatpush1.msra.mxu0 0.0
    %276 = vmatprep.subr.mxu0 0.0
    %277 = vmatpush1.msra.mxu0 0.0
    %278 = vmatprep.subr.mxu0 0.0
    %279 = vmatpush1.msra.mxu0 0.0
    %280 = vmatprep.subr.mxu0 0.0
    %281 = vmatpush1.msra.mxu0 0.0
    %282 = vmatprep.subr.mxu0 0.0
    %283 = vmatpush1.msra.mxu0 0.0
    %284 = vmatprep.subr.mxu0 0.0
    %285 = vmatpush1.msra.mxu0 0.0
    %286 = vmatprep.subr.mxu0 0.0
    %287 = vmatpush1.msra.mxu0 0.0
    %288 = vmatprep.subr.mxu0 0.0
    %289 = vmatpush1.msra.mxu0 0.0
    %290 = vmatprep.subr.mxu0 0.0
    %291 = vmatpush1.msra.mxu0 0.0
    %292 = vmatprep.subr.mxu0 0.0
    %293 = vmatpush1.msra.mxu0 0.0
    %294 = vmatprep.subr.mxu0 0.0
    %295 = vmatpush1.msra.mxu0 0.0
    %296 = vmatprep.subr.mxu0 0.0
    %297 = vmatpush1.msra.mxu0 0.0
    %298 = vmatprep.subr.mxu0 0.0
    %299 = vmatpush1.msra.mxu0 0.0
    %300 = vmatprep.subr.mxu0 0.0
    %301 = vmatpush1.msra.mxu0 0.0
    %302 = vmatprep.subr.mxu0 0.0
    %303 = vmatpush1.msra.mxu0 0.0
    %304 = vmatprep.subr.mxu0 0.0
    %305 = vmatpush1.msra.mxu0 0.0
    %306 = vmatprep.subr.mxu0 0.0
    %307 = vmatpush1.msra.mxu0 0.0
    %308 = vmatprep.subr.mxu0 0.0
    %309 = vmatpush1.msra.mxu0 0.0
    %310 = vmatprep.subr.mxu0 0.0
    %311 = vmatpush1.msra.mxu0 0.0
    %312 = vmatprep.subr.mxu0 0.0
    %313 = vmatpush1.msra.mxu0 0.0
    %314 = vmatprep.subr.mxu0 0.0
    %315 = vmatpush1.msra.mxu0 0.0
    %316 = vmatprep.subr.mxu0 0.0
    %317 = vmatpush1.msra.mxu0 0.0
    %318 = vmatprep.subr.mxu0 0.0
    %319 = vmatpush1.msra.mxu0 0.0
    %320 = vmatprep.subr.mxu0 0.0
    %321 = vmatpush1.msra.mxu0 0.0
    %322 = vmatprep.subr.mxu0 0.0
    %323 = vmatpush1.msra.mxu0 0.0
    %324 = vmatprep.subr.mxu0 0.0
    %325 = vmatpush1.msra.mxu0 0.0
    %326 = vmatprep.subr.mxu0 0.0
    %327 = vmatpush1.msra.mxu0 0.0
    %328 = vmatprep.subr.mxu0 0.0
    %329 = vmatpush1.msra.mxu0 0.0
    %330 = vmatprep.mubr.f32.mxu0 0.0
    %331 = vmatmul.mubr.f32.gmra.mrb[0].mxu0 %v219
    %v332 = vpop.f32.mrb[0].mxu0
    %v333 = vadd.f32 %v201, %v332
    %v334 = vpop.f32.mrb[0].mxu0
    %335 = vmatprep.mubr.f32.mxu0 0.0
    %336 = vmatmul.mubr.f32.gmra.mrb[0].mxu0 %v222
    %v337 = vpop.f32.mrb[0].mxu0
    %v338 = vadd.f32 %v202, %v337
    %v339 = vpop.f32.mrb[0].mxu0
    %340 = vmatprep.mubr.f32.mxu0 0.0
    %341 = vmatmul.mubr.f32.gmra.mrb[0].mxu0 %v225
    %v342 = vpop.f32.mrb[0].mxu0
    %v343 = vadd.f32 %v203, %v342
    %v344 = vpop.f32.mrb[0].mxu0
    %345 = vmatprep.mubr.f32.mxu0 0.0
    %346 = vmatmul.mubr.f32.gmra.mrb[0].mxu0 %v228
    %v347 = vpop.f32.mrb[0].mxu0
    %v348 = vadd.f32 %v204, %v347
    %v349 = vpop.f32.mrb[0].mxu0
    %350 = vmatprep.mubr.f32.mxu0 0.0
    %351 = vmatmul.mubr.f32.gmra.mrb[0].mxu0 %v231
    %v352 = vpop.f32.mrb[0].mxu0
    %v353 = vadd.f32 %v205, %v352
    %v354 = vpop.f32.mrb[0].mxu0
    %355 = vmatprep.mubr.f32.mxu0 0.0
    %356 = vmatmul.mubr.f32.gmra.mrb[0].mxu0 %v234
    %v357 = vpop.f32.mrb[0].mxu0
    %v358 = vadd.f32 %v206, %v357
    %v359 = vpop.f32.mrb[0].mxu0
    %360 = vmatprep.mubr.f32.mxu0 0.0
    %361 = vmatmul.mubr.f32.gmra.mrb[0].mxu0 %v237
    %v362 = vpop.f32.mrb[0].mxu0
    %v363 = vadd.f32 %v207, %v362
    %v364 = vpop.f32.mrb[0].mxu0
    %365 = vmatprep.mubr.f32.mxu0 0.0
    %366 = vmatmul.mubr.f32.gmra.mrb[0].mxu0 %v240
    %v367 = vpop.f32.mrb[0].mxu0
    %v368 = vadd.f32 %v208, %v367
    %v369 = vpop.f32.mrb[0].mxu0
    %370 = vmatprep.mubr.f32.mxu0 0.0
    %371 = vmatmul.mubr.f32.gmra.mrb[0].mxu0 %v243
    %v372 = vpop.f32.mrb[0].mxu0
    %v373 = vadd.f32 %v209, %v372
    %v374 = vpop.f32.mrb[0].mxu0
    %375 = vmatprep.mubr.f32.mxu0 0.0
    %376 = vmatmul.mubr.f32.gmra.mrb[0].mxu0 %v246
    %v377 = vpop.f32.mrb[0].mxu0
    %v378 = vadd.f32 %v210, %v377
    %v379 = vpop.f32.mrb[0].mxu0
    %380 = vmatprep.mubr.f32.mxu0 0.0
    %381 = vmatmul.mubr.f32.gmra.mrb[0].mxu0 %v249
    %v382 = vpop.f32.mrb[0].mxu0
    %v383 = vadd.f32 %v211, %v382
    %v384 = vpop.f32.mrb[0].mxu0
    %385 = vmatprep.mubr.f32.mxu0 0.0
    %386 = vmatmul.mubr.f32.gmra.mrb[0].mxu0 %v252
    %v387 = vpop.f32.mrb[0].mxu0
    %v388 = vadd.f32 %v212, %v387
    %v389 = vpop.f32.mrb[0].mxu0
    %390 = vmatprep.mubr.f32.mxu0 0.0
    %391 = vmatmul.mubr.f32.gmra.mrb[0].mxu0 %v255
    %v392 = vpop.f32.mrb[0].mxu0
    %v393 = vadd.f32 %v213, %v392
    %v394 = vpop.f32.mrb[0].mxu0
    %395 = vmatprep.mubr.f32.mxu0 0.0
    %396 = vmatmul.mubr.f32.gmra.mrb[0].mxu0 %v258
    %v397 = vpop.f32.mrb[0].mxu0
    %v398 = vadd.f32 %v214, %v397
    %v399 = vpop.f32.mrb[0].mxu0
    %400 = vmatprep.mubr.f32.mxu0 0.0
    %401 = vmatmul.mubr.f32.gmra.mrb[0].mxu0 %v261
    %v402 = vpop.f32.mrb[0].mxu0
    %v403 = vadd.f32 %v215, %v402
    %v404 = vpop.f32.mrb[0].mxu0
    %405 = vmatprep.mubr.f32.mxu0 0.0
    %406 = vmatmul.mubr.f32.gmra.mrb[0].mxu0 %v264
    %v407 = vpop.f32.mrb[0].mxu0
    %v408 = vadd.f32 %v216, %v407
    %v409 = vpop.f32.mrb[0].mxu0
    %410 = vdwg.mxu0
    %v411 = vld [vmem:[%s5] sm:$0xff]
    %v412 = vld [vmem:[%s5 + $0x8] sm:$0xff]
    %v413 = vld [vmem:[%s5 + $0x10] sm:$0xff]
    %v414 = vld [vmem:[%s5 + $0x18] sm:$0xff]
    %v415 = vld [vmem:[%s5 + $0x20] sm:$0xff]
    %v416 = vld [vmem:[%s5 + $0x28] sm:$0xff]
    %v417 = vld [vmem:[%s5 + $0x30] sm:$0xff]
    %v418 = vld [vmem:[%s5 + $0x38] sm:$0xff]
    %v419 = vld [vmem:[%s5 + $0x40] sm:$0xff]
    %v420 = vld [vmem:[%s5 + $0x48] sm:$0xff]
    %v421 = vld [vmem:[%s5 + $0x50] sm:$0xff]
    %v422 = vld [vmem:[%s5 + $0x58] sm:$0xff]
    %v423 = vld [vmem:[%s5 + $0x60] sm:$0xff]
    %v424 = vld [vmem:[%s5 + $0x68] sm:$0xff]
    %v425 = vld [vmem:[%s5 + $0x70] sm:$0xff]
    %v426 = vld [vmem:[%s5 + $0x78] sm:$0xff]
    %428 = vset.pattern.permute.xlu0 0
    %429 = vperm.xlu0 %428, %v411
    %v430 = vpop.permute.xlu0 %429
    %433 = vset.pattern.permute.xlu0 0
    %434 = vperm.xlu0 %433, %v412
    %v435 = vpop.permute.xlu0 %434
    %438 = vset.pattern.permute.xlu0 0
    %439 = vperm.xlu0 %438, %v413
    %v440 = vpop.permute.xlu0 %439
    %443 = vset.pattern.permute.xlu0 0
    %444 = vperm.xlu0 %443, %v414
    %v445 = vpop.permute.xlu0 %444
    %448 = vset.pattern.permute.xlu0 0
    %449 = vperm.xlu0 %448, %v415
    %v450 = vpop.permute.xlu0 %449
    %453 = vset.pattern.permute.xlu0 0
    %454 = vperm.xlu0 %453, %v416
    %v455 = vpop.permute.xlu0 %454
    %458 = vset.pattern.permute.xlu0 0
    %459 = vperm.xlu0 %458, %v417
    %v460 = vpop.permute.xlu0 %459
    %463 = vset.pattern.permute.xlu0 0
    %464 = vperm.xlu0 %463, %v418
    %v465 = vpop.permute.xlu0 %464
    %468 = vset.pattern.permute.xlu0 0
    %469 = vperm.xlu0 %468, %v419
    %v470 = vpop.permute.xlu0 %469
    %473 = vset.pattern.permute.xlu0 0
    %474 = vperm.xlu0 %473, %v420
    %v475 = vpop.permute.xlu0 %474
    %478 = vset.pattern.permute.xlu0 0
    %479 = vperm.xlu0 %478, %v421
    %v480 = vpop.permute.xlu0 %479
    %483 = vset.pattern.permute.xlu0 0
    %484 = vperm.xlu0 %483, %v422
    %v485 = vpop.permute.xlu0 %484
    %488 = vset.pattern.permute.xlu0 0
    %489 = vperm.xlu0 %488, %v423
    %v490 = vpop.permute.xlu0 %489
    %493 = vset.pattern.permute.xlu0 0
    %494 = vperm.xlu0 %493, %v424
    %v495 = vpop.permute.xlu0 %494
    %498 = vset.pattern.permute.xlu0 0
    %499 = vperm.xlu0 %498, %v425
    %v500 = vpop.permute.xlu0 %499
    %503 = vset.pattern.permute.xlu0 0
    %504 = vperm.xlu0 %503, %v426
    %v505 = vpop.permute.xlu0 %504
    %v507 = vadd.f32 %v333, %v430
    %v508 = vadd.f32 %v338, %v435
    %v509 = vadd.f32 %v343, %v440
    %v510 = vadd.f32 %v348, %v445
    %v511 = vadd.f32 %v353, %v450
    %v512 = vadd.f32 %v358, %v455
    %v513 = vadd.f32 %v363, %v460
    %v514 = vadd.f32 %v368, %v465
    %v515 = vadd.f32 %v373, %v470
    %v516 = vadd.f32 %v378, %v475
    %v517 = vadd.f32 %v383, %v480
    %v518 = vadd.f32 %v388, %v485
    %v519 = vadd.f32 %v393, %v490
    %v520 = vadd.f32 %v398, %v495
    %v521 = vadd.f32 %v403, %v500
    %v522 = vadd.f32 %v408, %v505
    %v523 = vmax.f32 %v507, 0.0
    %v524 = vmax.f32 %v508, 0.0
    %v525 = vmax.f32 %v509, 0.0
    %v526 = vmax.f32 %v510, 0.0
    %v527 = vmax.f32 %v511, 0.0
    %v528 = vmax.f32 %v512, 0.0
    %v529 = vmax.f32 %v513, 0.0
    %v530 = vmax.f32 %v514, 0.0
    %v531 = vmax.f32 %v515, 0.0
    %v532 = vmax.f32 %v516, 0.0
    %v533 = vmax.f32 %v517, 0.0
    %v534 = vmax.f32 %v518, 0.0
    %v535 = vmax.f32 %v519, 0.0
    %v536 = vmax.f32 %v520, 0.0
    %v537 = vmax.f32 %v521, 0.0
    %v538 = vmax.f32 %v522, 0.0
    %v539 = vld [vmem:[#allocation2] sm:$0xff]
    %540 = vmatprep.subr.mxu0 0.0
    %541 = vmatpush1.xpose.msra.mxu0 %v523
    %542 = vmatprep.subr.mxu0 0.0
    %543 = vmatpush1.xpose.msra.mxu0 %v524
    %544 = vmatprep.subr.mxu0 0.0
    %545 = vmatpush1.xpose.msra.mxu0 %v525
    %546 = vmatprep.subr.mxu0 0.0
    %547 = vmatpush1.xpose.msra.mxu0 %v526
    %548 = vmatprep.subr.mxu0 0.0
    %549 = vmatpush1.xpose.msra.mxu0 %v527
    %550 = vmatprep.subr.mxu0 0.0
    %551 = vmatpush1.xpose.msra.mxu0 %v528
    %552 = vmatprep.subr.mxu0 0.0
    %553 = vmatpush1.xpose.msra.mxu0 %v529
    %554 = vmatprep.subr.mxu0 0.0
    %555 = vmatpush1.xpose.msra.mxu0 %v530
    %556 = vmatprep.subr.mxu0 0.0
    %557 = vmatpush1.xpose.msra.mxu0 %v531
    %558 = vmatprep.subr.mxu0 0.0
    %559 = vmatpush1.xpose.msra.mxu0 %v532
    %560 = vmatprep.subr.mxu0 0.0
    %561 = vmatpush1.xpose.msra.mxu0 %v533
    %562 = vmatprep.subr.mxu0 0.0
    %563 = vmatpush1.xpose.msra.mxu0 %v534
    %564 = vmatprep.subr.mxu0 0.0
    %565 = vmatpush1.xpose.msra.mxu0 %v535
    %566 = vmatprep.subr.mxu0 0.0
    %567 = vmatpush1.xpose.msra.mxu0 %v536
    %568 = vmatprep.subr.mxu0 0.0
    %569 = vmatpush1.xpose.msra.mxu0 %v537
    %570 = vmatprep.subr.mxu0 0.0
    %571 = vmatpush1.xpose.msra.mxu0 %v538
    %572 = vmatprep.subr.mxu0 0.0
    %573 = vmatpush1.xpose.msra.mxu0 0.0
    %574 = vmatprep.subr.mxu0 0.0
    %575 = vmatpush1.xpose.msra.mxu0 0.0
    %576 = vmatprep.subr.mxu0 0.0
    %577 = vmatpush1.xpose.msra.mxu0 0.0
    %578 = vmatprep.subr.mxu0 0.0
    %579 = vmatpush1.xpose.msra.mxu0 0.0
    %580 = vmatprep.subr.mxu0 0.0
    %581 = vmatpush1.xpose.msra.mxu0 0.0
    %582 = vmatprep.subr.mxu0 0.0
    %583 = vmatpush1.xpose.msra.mxu0 0.0
    %584 = vmatprep.subr.mxu0 0.0
    %585 = vmatpush1.xpose.msra.mxu0 0.0
    %586 = vmatprep.subr.mxu0 0.0
    %587 = vmatpush1.xpose.msra.mxu0 0.0
    %588 = vmatprep.subr.mxu0 0.0
    %589 = vmatpush1.xpose.msra.mxu0 0.0
    %590 = vmatprep.subr.mxu0 0.0
    %591 = vmatpush1.xpose.msra.mxu0 0.0
    %592 = vmatprep.subr.mxu0 0.0
    %593 = vmatpush1.xpose.msra.mxu0 0.0
    %594 = vmatprep.subr.mxu0 0.0
    %595 = vmatpush1.xpose.msra.mxu0 0.0
    %596 = vmatprep.subr.mxu0 0.0
    %597 = vmatpush1.xpose.msra.mxu0 0.0
    %598 = vmatprep.subr.mxu0 0.0
    %599 = vmatpush1.xpose.msra.mxu0 0.0
    %600 = vmatprep.subr.mxu0 0.0
    %601 = vmatpush1.xpose.msra.mxu0 0.0
    %602 = vmatprep.subr.mxu0 0.0
    %603 = vmatpush1.xpose.msra.mxu0 0.0
    %604 = vmatprep.mubr.f32.mxu0 0.0
    %605 = vmatmul.mubr.f32.gmra.mrb[0].mxu0 %v82
    %v606 = vpop.f32.mrb[0].mxu0
    %v607 = vadd.f32 0.0, %v606
    %v608 = vpop.f32.mrb[0].mxu0
    %609 = vdwg.mxu0
    %v610 = vadd.f32 %v539, %v607
    %611 = vst [vmem:[#allocation2] sm:$0xff] %v610
    // Predicated region
    $region62: #{tpu_custom_call.1} parent=1 // pred_check
      %p612 = pneg %p59
    $region63: #{tpu_custom_call.1} parent=1 // pred_check_branch
      %614 = sbr.rel (%p612) target = $region65
    $region64: #{tpu_custom_call.1} parent=1 // pred_region
      %v615 = vld [vmem:[#allocation2] sm:$0xff]
      %v616 = vld [vmem:[%s12] sm:$0xff]
      %v617 = vld [vmem:[%s6] sm:$0xff]
      %v618 = vld [vmem:[%s6 + $0x8] sm:$0xff]
      %v619 = vld [vmem:[%s6 + $0x10] sm:$0xff]
      %v620 = vld [vmem:[%s6 + $0x18] sm:$0xff]
      %v621 = vld [vmem:[%s6 + $0x20] sm:$0xff]
      %v622 = vld [vmem:[%s6 + $0x28] sm:$0xff]
      %v623 = vld [vmem:[%s6 + $0x30] sm:$0xff]
      %v624 = vld [vmem:[%s6 + $0x38] sm:$0xff]
      %v625 = vld [vmem:[%s6 + $0x40] sm:$0xff]
      %v626 = vld [vmem:[%s6 + $0x48] sm:$0xff]
      %v627 = vld [vmem:[%s6 + $0x50] sm:$0xff]
      %v628 = vld [vmem:[%s6 + $0x58] sm:$0xff]
      %v629 = vld [vmem:[%s6 + $0x60] sm:$0xff]
      %v630 = vld [vmem:[%s6 + $0x68] sm:$0xff]
      %v631 = vld [vmem:[%s6 + $0x70] sm:$0xff]
      %v632 = vld [vmem:[%s6 + $0x78] sm:$0xff]
      %v633 = vld [vmem:[%s6 + $0x80] sm:$0xff]
      %v634 = vld [vmem:[%s6 + $0x88] sm:$0xff]
      %v635 = vld [vmem:[%s6 + $0x90] sm:$0xff]
      %v636 = vld [vmem:[%s6 + $0x98] sm:$0xff]
      %v637 = vld [vmem:[%s6 + $0xa0] sm:$0xff]
      %v638 = vld [vmem:[%s6 + $0xa8] sm:$0xff]
      %v639 = vld [vmem:[%s6 + $0xb0] sm:$0xff]
      %v640 = vld [vmem:[%s6 + $0xb8] sm:$0xff]
      %v641 = vld [vmem:[%s6 + $0xc0] sm:$0xff]
      %v642 = vld [vmem:[%s6 + $0xc8] sm:$0xff]
      %v643 = vld [vmem:[%s6 + $0xd0] sm:$0xff]
      %v644 = vld [vmem:[%s6 + $0xd8] sm:$0xff]
      %v645 = vld [vmem:[%s6 + $0xe0] sm:$0xff]
      %v646 = vld [vmem:[%s6 + $0xe8] sm:$0xff]
      %v647 = vld [vmem:[%s6 + $0xf0] sm:$0xff]
      %v648 = vld [vmem:[%s6 + $0xf8] sm:$0xff]
      %v649 = vld [vmem:[%s6 + $0x100] sm:$0xff]
      %v650 = vld [vmem:[%s6 + $0x108] sm:$0xff]
      %v651 = vld [vmem:[%s6 + $0x110] sm:$0xff]
      %v652 = vld [vmem:[%s6 + $0x118] sm:$0xff]
      %v653 = vld [vmem:[%s6 + $0x120] sm:$0xff]
      %v654 = vld [vmem:[%s6 + $0x128] sm:$0xff]
      %v655 = vld [vmem:[%s6 + $0x130] sm:$0xff]
      %v656 = vld [vmem:[%s6 + $0x138] sm:$0xff]
      %v657 = vld [vmem:[%s6 + $0x140] sm:$0xff]
      %v658 = vld [vmem:[%s6 + $0x148] sm:$0xff]
      %v659 = vld [vmem:[%s6 + $0x150] sm:$0xff]
      %v660 = vld [vmem:[%s6 + $0x158] sm:$0xff]
      %v661 = vld [vmem:[%s6 + $0x160] sm:$0xff]
      %v662 = vld [vmem:[%s6 + $0x168] sm:$0xff]
      %v663 = vld [vmem:[%s6 + $0x170] sm:$0xff]
      %v664 = vld [vmem:[%s6 + $0x178] sm:$0xff]
      %v665 = vld [vmem:[%s7] sm:$0x7]
      %v667 = vlaneseq
      %v668 = vshrl.u32 %v667, 7
      %v669 = vsub.s32 0, %v668
      %v670 = vrot.slane %v665, %v669
      %v671 = vlaneseq
      %v672 = vshrl.u32 %v671, 7
      %v673 = vsub.s32 1, %v672
      %v674 = vrot.slane %v665, %v673
      %v675 = vlaneseq
      %v676 = vshrl.u32 %v675, 7
      %v677 = vsub.s32 2, %v676
      %v678 = vrot.slane %v665, %v677
      %682 = vmatprep.subr.mxu0 %v618
      %683 = vmatpush1.msra.mxu0 %v617
      %684 = vmatprep.subr.mxu0 %v621
      %685 = vmatpush1.msra.mxu0 %v620
      %686 = vmatprep.subr.mxu0 %v624
      %687 = vmatpush1.msra.mxu0 %v623
      %688 = vmatprep.subr.mxu0 %v627
      %689 = vmatpush1.msra.mxu0 %v626
      %690 = vmatprep.subr.mxu0 %v630
      %691 = vmatpush1.msra.mxu0 %v629
      %692 = vmatprep.subr.mxu0 %v633
      %693 = vmatpush1.msra.mxu0 %v632
      %694 = vmatprep.subr.mxu0 %v636
      %695 = vmatpush1.msra.mxu0 %v635
      %696 = vmatprep.subr.mxu0 %v639
      %697 = vmatpush1.msra.mxu0 %v638
      %698 = vmatprep.subr.mxu0 %v642
      %699 = vmatpush1.msra.mxu0 %v641
      %700 = vmatprep.subr.mxu0 %v645
      %701 = vmatpush1.msra.mxu0 %v644
      %702 = vmatprep.subr.mxu0 %v648
      %703 = vmatpush1.msra.mxu0 %v647
      %704 = vmatprep.subr.mxu0 %v651
      %705 = vmatpush1.msra.mxu0 %v650
      %706 = vmatprep.subr.mxu0 %v654
      %707 = vmatpush1.msra.mxu0 %v653
      %708 = vmatprep.subr.mxu0 %v657
      %709 = vmatpush1.msra.mxu0 %v656
      %710 = vmatprep.subr.mxu0 %v660
      %711 = vmatpush1.msra.mxu0 %v659
      %712 = vmatprep.subr.mxu0 %v663
      %713 = vmatpush1.msra.mxu0 %v662
      %714 = vmatprep.subr.mxu0 0.0
      %715 = vmatpush1.msra.mxu0 0.0
      %716 = vmatprep.subr.mxu0 0.0
      %717 = vmatpush1.msra.mxu0 0.0
      %718 = vmatprep.subr.mxu0 0.0
      %719 = vmatpush1.msra.mxu0 0.0
      %720 = vmatprep.subr.mxu0 0.0
      %721 = vmatpush1.msra.mxu0 0.0
      %722 = vmatprep.subr.mxu0 0.0
      %723 = vmatpush1.msra.mxu0 0.0
      %724 = vmatprep.subr.mxu0 0.0
      %725 = vmatpush1.msra.mxu0 0.0
      %726 = vmatprep.subr.mxu0 0.0
      %727 = vmatpush1.msra.mxu0 0.0
      %728 = vmatprep.subr.mxu0 0.0
      %729 = vmatpush1.msra.mxu0 0.0
      %730 = vmatprep.subr.mxu0 0.0
      %731 = vmatpush1.msra.mxu0 0.0
      %732 = vmatprep.subr.mxu0 0.0
      %733 = vmatpush1.msra.mxu0 0.0
      %734 = vmatprep.subr.mxu0 0.0
      %735 = vmatpush1.msra.mxu0 0.0
      %736 = vmatprep.subr.mxu0 0.0
      %737 = vmatpush1.msra.mxu0 0.0
      %738 = vmatprep.subr.mxu0 0.0
      %739 = vmatpush1.msra.mxu0 0.0
      %740 = vmatprep.subr.mxu0 0.0
      %741 = vmatpush1.msra.mxu0 0.0
      %742 = vmatprep.subr.mxu0 0.0
      %743 = vmatpush1.msra.mxu0 0.0
      %744 = vmatprep.subr.mxu0 0.0
      %745 = vmatpush1.msra.mxu0 0.0
      %746 = vmatprep.mubr.f32.mxu0 0.0
      %747 = vmatmul.mubr.f32.gmra.mrb[0].mxu0 %v615
      %v748 = vpop.f32.mrb[0].mxu0
      %v749 = vadd.f32 %v670, %v748
      %v750 = vpop.f32.mrb[0].mxu0
      %v751 = vadd.f32 %v674, %v750
      %752 = vdwg.mxu0
      %753 = vmatprep.subr.mxu0 0.0
      %754 = vmatpush1.msra.mxu0 %v619
      %755 = vmatprep.subr.mxu0 0.0
      %756 = vmatpush1.msra.mxu0 %v622
      %757 = vmatprep.subr.mxu0 0.0
      %758 = vmatpush1.msra.mxu0 %v625
      %759 = vmatprep.subr.mxu0 0.0
      %760 = vmatpush1.msra.mxu0 %v628
      %761 = vmatprep.subr.mxu0 0.0
      %762 = vmatpush1.msra.mxu0 %v631
      %763 = vmatprep.subr.mxu0 0.0
      %764 = vmatpush1.msra.mxu0 %v634
      %765 = vmatprep.subr.mxu0 0.0
      %766 = vmatpush1.msra.mxu0 %v637
      %767 = vmatprep.subr.mxu0 0.0
      %768 = vmatpush1.msra.mxu0 %v640
      %769 = vmatprep.subr.mxu0 0.0
      %770 = vmatpush1.msra.mxu0 %v643
      %771 = vmatprep.subr.mxu0 0.0
      %772 = vmatpush1.msra.mxu0 %v646
      %773 = vmatprep.subr.mxu0 0.0
      %774 = vmatpush1.msra.mxu0 %v649
      %775 = vmatprep.subr.mxu0 0.0
      %776 = vmatpush1.msra.mxu0 %v652
      %777 = vmatprep.subr.mxu0 0.0
      %778 = vmatpush1.msra.mxu0 %v655
      %779 = vmatprep.subr.mxu0 0.0
      %780 = vmatpush1.msra.mxu0 %v658
      %781 = vmatprep.subr.mxu0 0.0
      %782 = vmatpush1.msra.mxu0 %v661
      %783 = vmatprep.subr.mxu0 0.0
      %784 = vmatpush1.msra.mxu0 %v664
      %785 = vmatprep.subr.mxu0 0.0
      %786 = vmatpush1.msra.mxu0 0.0
      %787 = vmatprep.subr.mxu0 0.0
      %788 = vmatpush1.msra.mxu0 0.0
      %789 = vmatprep.subr.mxu0 0.0
      %790 = vmatpush1.msra.mxu0 0.0
      %791 = vmatprep.subr.mxu0 0.0
      %792 = vmatpush1.msra.mxu0 0.0
      %793 = vmatprep.subr.mxu0 0.0
      %794 = vmatpush1.msra.mxu0 0.0
      %795 = vmatprep.subr.mxu0 0.0
      %796 = vmatpush1.msra.mxu0 0.0
      %797 = vmatprep.subr.mxu0 0.0
      %798 = vmatpush1.msra.mxu0 0.0
      %799 = vmatprep.subr.mxu0 0.0
      %800 = vmatpush1.msra.mxu0 0.0
      %801 = vmatprep.subr.mxu0 0.0
      %802 = vmatpush1.msra.mxu0 0.0
      %803 = vmatprep.subr.mxu0 0.0
      %804 = vmatpush1.msra.mxu0 0.0
      %805 = vmatprep.subr.mxu0 0.0
      %806 = vmatpush1.msra.mxu0 0.0
      %807 = vmatprep.subr.mxu0 0.0
      %808 = vmatpush1.msra.mxu0 0.0
      %809 = vmatprep.subr.mxu0 0.0
      %810 = vmatpush1.msra.mxu0 0.0
      %811 = vmatprep.subr.mxu0 0.0
      %812 = vmatpush1.msra.mxu0 0.0
      %813 = vmatprep.subr.mxu0 0.0
      %814 = vmatpush1.msra.mxu0 0.0
      %815 = vmatprep.subr.mxu0 0.0
      %816 = vmatpush1.msra.mxu0 0.0
      %817 = vmatprep.mubr.f32.mxu0 0.0
      %818 = vmatmul.mubr.f32.gmra.mrb[0].mxu0 %v615
      %v819 = vpop.f32.mrb[0].mxu0
      %v820 = vadd.f32 %v678, %v819
      %v821 = vpop.f32.mrb[0].mxu0
      %822 = vdwg.mxu0
      %v823 = vld [vmem:[#allocation3] sm:$0xff]
      %v824 = vld [vmem:[#allocation3 + $0x8] sm:$0xff]
      %v825 = vld [vmem:[#allocation3 + $0x10] sm:$0xff]
      %v826 = vld [vmem:[#allocation3 + $0x18] sm:$0xff]
      %v827 = vld [vmem:[#allocation3 + $0x20] sm:$0xff]
      %v828 = vld [vmem:[#allocation3 + $0x28] sm:$0xff]
      %v829 = vld [vmem:[#allocation3 + $0x30] sm:$0xff]
      %v830 = vld [vmem:[#allocation3 + $0x38] sm:$0xff]
      %v831 = vld [vmem:[#allocation3 + $0x40] sm:$0xff]
      %v832 = vld [vmem:[#allocation3 + $0x48] sm:$0xff]
      %v833 = vld [vmem:[#allocation3 + $0x50] sm:$0xff]
      %v834 = vld [vmem:[#allocation3 + $0x58] sm:$0xff]
      %v835 = vld [vmem:[#allocation3 + $0x60] sm:$0xff]
      %v836 = vld [vmem:[#allocation3 + $0x68] sm:$0xff]
      %v837 = vld [vmem:[#allocation3 + $0x70] sm:$0xff]
      %v838 = vld [vmem:[#allocation3 + $0x78] sm:$0xff]
      %v839 = vld [vmem:[#allocation3 + $0x80] sm:$0xff]
      %v840 = vld [vmem:[#allocation3 + $0x88] sm:$0xff]
      %v841 = vld [vmem:[#allocation3 + $0x90] sm:$0xff]
      %v842 = vld [vmem:[#allocation3 + $0x98] sm:$0xff]
      %v843 = vld [vmem:[#allocation3 + $0xa0] sm:$0xff]
      %v844 = vld [vmem:[#allocation3 + $0xa8] sm:$0xff]
      %v845 = vld [vmem:[#allocation3 + $0xb0] sm:$0xff]
      %v846 = vld [vmem:[#allocation3 + $0xb8] sm:$0xff]
      %v847 = vld [vmem:[#allocation3 + $0xc0] sm:$0xff]
      %v848 = vld [vmem:[#allocation3 + $0xc8] sm:$0xff]
      %v849 = vld [vmem:[#allocation3 + $0xd0] sm:$0xff]
      %v850 = vld [vmem:[#allocation3 + $0xd8] sm:$0xff]
      %v851 = vld [vmem:[#allocation3 + $0xe0] sm:$0xff]
      %v852 = vld [vmem:[#allocation3 + $0xe8] sm:$0xff]
      %v853 = vld [vmem:[#allocation3 + $0xf0] sm:$0xff]
      %v854 = vld [vmem:[#allocation3 + $0xf8] sm:$0xff]
      %v855 = vld [vmem:[#allocation3 + $0x100] sm:$0xff]
      %v856 = vld [vmem:[#allocation3 + $0x108] sm:$0xff]
      %v857 = vld [vmem:[#allocation3 + $0x110] sm:$0xff]
      %v858 = vld [vmem:[#allocation3 + $0x118] sm:$0xff]
      %v859 = vld [vmem:[#allocation3 + $0x120] sm:$0xff]
      %v860 = vld [vmem:[#allocation3 + $0x128] sm:$0xff]
      %v861 = vld [vmem:[#allocation3 + $0x130] sm:$0xff]
      %v862 = vld [vmem:[#allocation3 + $0x138] sm:$0xff]
      %v863 = vld [vmem:[#allocation3 + $0x140] sm:$0xff]
      %v864 = vld [vmem:[#allocation3 + $0x148] sm:$0xff]
      %v865 = vld [vmem:[#allocation3 + $0x150] sm:$0xff]
      %v866 = vld [vmem:[#allocation3 + $0x158] sm:$0xff]
      %v867 = vld [vmem:[#allocation3 + $0x160] sm:$0xff]
      %v868 = vld [vmem:[#allocation3 + $0x168] sm:$0xff]
      %v869 = vld [vmem:[#allocation3 + $0x170] sm:$0xff]
      %v870 = vld [vmem:[#allocation3 + $0x178] sm:$0xff]
      %v871 = vld [vmem:[%s9] sm:$0x7]
      %v873 = vlaneseq
      %v874 = vshrl.u32 %v873, 7
      %v875 = vsub.s32 0, %v874
      %v876 = vrot.slane %v871, %v875
      %v877 = vlaneseq
      %v878 = vshrl.u32 %v877, 7
      %v879 = vsub.s32 1, %v878
      %v880 = vrot.slane %v871, %v879
      %v881 = vlaneseq
      %v882 = vshrl.u32 %v881, 7
      %v883 = vsub.s32 2, %v882
      %v884 = vrot.slane %v871, %v883
      %888 = vmatprep.subr.mxu0 %v824
      %889 = vmatpush1.msra.mxu0 %v823
      %890 = vmatprep.subr.mxu0 %v827
      %891 = vmatpush1.msra.mxu0 %v826
      %892 = vmatprep.subr.mxu0 %v830
      %893 = vmatpush1.msra.mxu0 %v829
      %894 = vmatprep.subr.mxu0 %v833
      %895 = vmatpush1.msra.mxu0 %v832
      %896 = vmatprep.subr.mxu0 %v836
      %897 = vmatpush1.msra.mxu0 %v835
      %898 = vmatprep.subr.mxu0 %v839
      %899 = vmatpush1.msra.mxu0 %v838
      %900 = vmatprep.subr.mxu0 %v842
      %901 = vmatpush1.msra.mxu0 %v841
      %902 = vmatprep.subr.mxu0 %v845
      %903 = vmatpush1.msra.mxu0 %v844
      %904 = vmatprep.subr.mxu0 %v848
      %905 = vmatpush1.msra.mxu0 %v847
      %906 = vmatprep.subr.mxu0 %v851
      %907 = vmatpush1.msra.mxu0 %v850
      %908 = vmatprep.subr.mxu0 %v854
      %909 = vmatpush1.msra.mxu0 %v853
      %910 = vmatprep.subr.mxu0 %v857
      %911 = vmatpush1.msra.mxu0 %v856
      %912 = vmatprep.subr.mxu0 %v860
      %913 = vmatpush1.msra.mxu0 %v859
      %914 = vmatprep.subr.mxu0 %v863
      %915 = vmatpush1.msra.mxu0 %v862
      %916 = vmatprep.subr.mxu0 %v866
      %917 = vmatpush1.msra.mxu0 %v865
      %918 = vmatprep.subr.mxu0 %v869
      %919 = vmatpush1.msra.mxu0 %v868
      %920 = vmatprep.subr.mxu0 0.0
      %921 = vmatpush1.msra.mxu0 0.0
      %922 = vmatprep.subr.mxu0 0.0
      %923 = vmatpush1.msra.mxu0 0.0
      %924 = vmatprep.subr.mxu0 0.0
      %925 = vmatpush1.msra.mxu0 0.0
      %926 = vmatprep.subr.mxu0 0.0
      %927 = vmatpush1.msra.mxu0 0.0
      %928 = vmatprep.subr.mxu0 0.0
      %929 = vmatpush1.msra.mxu0 0.0
      %930 = vmatprep.subr.mxu0 0.0
      %931 = vmatpush1.msra.mxu0 0.0
      %932 = vmatprep.subr.mxu0 0.0
      %933 = vmatpush1.msra.mxu0 0.0
      %934 = vmatprep.subr.mxu0 0.0
      %935 = vmatpush1.msra.mxu0 0.0
      %936 = vmatprep.subr.mxu0 0.0
      %937 = vmatpush1.msra.mxu0 0.0
      %938 = vmatprep.subr.mxu0 0.0
      %939 = vmatpush1.msra.mxu0 0.0
      %940 = vmatprep.subr.mxu0 0.0
      %941 = vmatpush1.msra.mxu0 0.0
      %942 = vmatprep.subr.mxu0 0.0
      %943 = vmatpush1.msra.mxu0 0.0
      %944 = vmatprep.subr.mxu0 0.0
      %945 = vmatpush1.msra.mxu0 0.0
      %946 = vmatprep.subr.mxu0 0.0
      %947 = vmatpush1.msra.mxu0 0.0
      %948 = vmatprep.subr.mxu0 0.0
      %949 = vmatpush1.msra.mxu0 0.0
      %950 = vmatprep.subr.mxu0 0.0
      %951 = vmatpush1.msra.mxu0 0.0
      %952 = vmatprep.mubr.f32.mxu0 0.0
      %953 = vmatmul.mubr.f32.gmra.mrb[0].mxu0 %v616
      %v954 = vpop.f32.mrb[0].mxu0
      %v955 = vadd.f32 %v876, %v954
      %v956 = vpop.f32.mrb[0].mxu0
      %v957 = vadd.f32 %v880, %v956
      %958 = vdwg.mxu0
      %959 = vmatprep.subr.mxu0 0.0
      %960 = vmatpush1.msra.mxu0 %v825
      %961 = vmatprep.subr.mxu0 0.0
      %962 = vmatpush1.msra.mxu0 %v828
      %963 = vmatprep.subr.mxu0 0.0
      %964 = vmatpush1.msra.mxu0 %v831
      %965 = vmatprep.subr.mxu0 0.0
      %966 = vmatpush1.msra.mxu0 %v834
      %967 = vmatprep.subr.mxu0 0.0
      %968 = vmatpush1.msra.mxu0 %v837
      %969 = vmatprep.subr.mxu0 0.0
      %970 = vmatpush1.msra.mxu0 %v840
      %971 = vmatprep.subr.mxu0 0.0
      %972 = vmatpush1.msra.mxu0 %v843
      %973 = vmatprep.subr.mxu0 0.0
      %974 = vmatpush1.msra.mxu0 %v846
      %975 = vmatprep.subr.mxu0 0.0
      %976 = vmatpush1.msra.mxu0 %v849
      %977 = vmatprep.subr.mxu0 0.0
      %978 = vmatpush1.msra.mxu0 %v852
      %979 = vmatprep.subr.mxu0 0.0
      %980 = vmatpush1.msra.mxu0 %v855
      %981 = vmatprep.subr.mxu0 0.0
      %982 = vmatpush1.msra.mxu0 %v858
      %983 = vmatprep.subr.mxu0 0.0
      %984 = vmatpush1.msra.mxu0 %v861
      %985 = vmatprep.subr.mxu0 0.0
      %986 = vmatpush1.msra.mxu0 %v864
      %987 = vmatprep.subr.mxu0 0.0
      %988 = vmatpush1.msra.mxu0 %v867
      %989 = vmatprep.subr.mxu0 0.0
      %990 = vmatpush1.msra.mxu0 %v870
      %991 = vmatprep.subr.mxu0 0.0
      %992 = vmatpush1.msra.mxu0 0.0
      %993 = vmatprep.subr.mxu0 0.0
      %994 = vmatpush1.msra.mxu0 0.0
      %995 = vmatprep.subr.mxu0 0.0
      %996 = vmatpush1.msra.mxu0 0.0
      %997 = vmatprep.subr.mxu0 0.0
      %998 = vmatpush1.msra.mxu0 0.0
      %999 = vmatprep.subr.mxu0 0.0
      %1000 = vmatpush1.msra.mxu0 0.0
      %1001 = vmatprep.subr.mxu0 0.0
      %1002 = vmatpush1.msra.mxu0 0.0
      %1003 = vmatprep.subr.mxu0 0.0
      %1004 = vmatpush1.msra.mxu0 0.0
      %1005 = vmatprep.subr.mxu0 0.0
      %1006 = vmatpush1.msra.mxu0 0.0
      %1007 = vmatprep.subr.mxu0 0.0
      %1008 = vmatpush1.msra.mxu0 0.0
      %1009 = vmatprep.subr.mxu0 0.0
      %1010 = vmatpush1.msra.mxu0 0.0
      %1011 = vmatprep.subr.mxu0 0.0
      %1012 = vmatpush1.msra.mxu0 0.0
      %1013 = vmatprep.subr.mxu0 0.0
      %1014 = vmatpush1.msra.mxu0 0.0
      %1015 = vmatprep.subr.mxu0 0.0
      %1016 = vmatpush1.msra.mxu0 0.0
      %1017 = vmatprep.subr.mxu0 0.0
      %1018 = vmatpush1.msra.mxu0 0.0
      %1019 = vmatprep.subr.mxu0 0.0
      %1020 = vmatpush1.msra.mxu0 0.0
      %1021 = vmatprep.subr.mxu0 0.0
      %1022 = vmatpush1.msra.mxu0 0.0
      %1023 = vmatprep.mubr.f32.mxu0 0.0
      %1024 = vmatmul.mubr.f32.gmra.mrb[0].mxu0 %v616
      %v1025 = vpop.f32.mrb[0].mxu0
      %v1026 = vadd.f32 %v884, %v1025
      %v1027 = vpop.f32.mrb[0].mxu0
      %1028 = vdwg.mxu0
      %v1029 = vadd.f32 %v749, %v955
      %v1030 = vxor.u32 %v1029, 2147483648
      %v1031 = vmul.f32 %v1030, 1.442695
      %v1032 = vpow.pop %v1031
      %v1033 = vadd.f32 %v1032, 1.0
      %v1034 = vrcp.pop %v1033
      %v1035 = vmul.f32 1.0, %v1034
      %v1036 = vadd.f32 %v751, %v957
      %v1037 = vxor.u32 %v1036, 2147483648
      %v1038 = vmul.f32 %v1037, 1.442695
      %v1039 = vpow.pop %v1038
      %v1040 = vadd.f32 %v1039, 1.0
      %v1041 = vrcp.pop %v1040
      %v1042 = vmul.f32 1.0, %v1041
      %v1043 = vmul.f32 %v1035, %v1026
      %v1044 = vadd.f32 %v820, %v1043
      %v1045 = vtanh.pop %v1044
      %v1046 = vsub.f32 1.0, %v1042
      %v1047 = vmul.f32 %v1046, %v1045
      %v1048 = vmul.f32 %v1042, %v616
      %v1049 = vadd.f32 %v1047, %v1048
      %v1050 = vlaneseq
      %v1051 = vand.u32 %v1050, 127
      %vm1052 = vcmp.lt.s32.totalorder %v1051, 32
      %v1053 = vsel %vm1052, 1, 0
      %v1054 = vcvt.s32.f32 %v1053
      %v1055 = vmul.f32 %v1049, %v1054
      %1056 = vadd.xlane.f32.xlu0 %v1055
      %v1057 = vpop.xlane.xlu0 %1056
      %v1058 = vmul.f32 %v1057, 0.03125
      %v1059 = vsub.f32 %v1049, %v1058
      %v1060 = vmul.f32 %v1059, %v1054
      %v1061 = vmul.f32 %v1060, %v1060
      %1062 = vadd.xlane.f32.xlu0 %v1061
      %v1063 = vpop.xlane.xlu0 %1062
      %v1064 = vmul.f32 %v1063, 0.03125
      %v1065 = vadd.f32 %v1064, 1e-05
      %v1066 = vrsqrt.pop %v1065
      %v1067 = vmul.f32 %v1060, %v1066
      %v1068 = vld [vmem:[%s10] sm:$0x1]
      %v1070 = vlaneseq
      %v1071 = vshrl.u32 %v1070, 7
      %v1072 = vsub.s32 0, %v1071
      %v1073 = vrot.slane %v1068, %v1072
      %v1075 = vmul.f32 %v1067, %v1073
      %v1076 = vld [vmem:[%s11] sm:$0x1]
      %v1078 = vlaneseq
      %v1079 = vshrl.u32 %v1078, 7
      %v1080 = vsub.s32 0, %v1079
      %v1081 = vrot.slane %v1076, %v1080
      %v1083 = vadd.f32 %v1075, %v1081
      %1084 = vst [vmem:[#allocation6] sm:$0xff] %v1083
    $region65: #{tpu_custom_call.1} parent=1 // pred_fallthru
      _
    // Predicated region
    $region66: #{tpu_custom_call.1} parent=1 // pred_check
      _
    $region67: #{tpu_custom_call.1} parent=1 // pred_check_branch
      %1086 = sbr.rel (0) target = $region69
    $region68: #{tpu_custom_call.1} parent=1 // pred_region
      %s1088 = ssub.s32 128, 128
      %1089 = vsyncadd [#allocation5], %s1088
      %s1091 = sshll.u32 [#allocation6], 4
      %s1092 = int_to_ptr.vmem [resolvable:$true] %s1091
      %1094 = dma.vmem_to_hbm [thread:$0]  %s1092, 128, %s13, [#allocation5]
    $region69: #{tpu_custom_call.1} parent=1 // pred_fallthru
      _
    // Predicated region
    $region70: #{tpu_custom_call.1} parent=1 // pred_check
      _
    $region71: #{tpu_custom_call.1} parent=1 // pred_check_branch
      %1096 = sbr.rel (0) target = $region73
    $region72: #{tpu_custom_call.1} parent=1 // pred_region
      %1097 = dma.done [#allocation5], 128
    $region73: #{tpu_custom_call.1} parent=1 // pred_fallthru
      _
    %1098 = vsyncpa [#allocation4], 1
    %1099 = vsyncpa [#allocation5], 1

</llo_original>
